<compile_context>
chip_gen: v7x
topology: tpu7x:2x2x1
jax: 0.10.0
libtpu: 0.0.40
codegen_flags: <defaults>
</compile_context>

<pallas_src>
import jax
import jax.numpy as jnp
from jax.experimental import pallas as pl
from jax.experimental.pallas import tpu as pltpu


def _round_up(x, m):
    return (x + m - 1) // m * m


def _critic_kernel(s_ref, a_ref,
                   w1s_ref, w1a_ref, b1_ref,
                   w2a_ref, b2a_ref, w2b_ref, b2b_ref,
                   w3_ref, b3_ref,
                   out_ref):
    H1 = w1s_ref.shape[1] // 2

    # ---- Layer 1: fused across both heads, concat-free (f32 LHS). ----------
    #      sa @ W == state @ W_s + action @ W_a
    h = (jnp.dot(s_ref[...], w1s_ref[...], preferred_element_type=jnp.float32)
         + jnp.dot(a_ref[...], w1a_ref[...], preferred_element_type=jnp.float32)
         + b1_ref[...])
    h = jnp.maximum(h, 0.0)
    h1 = h[:, :H1].astype(jnp.bfloat16)        # head-1 activations (lane-aligned)
    h2 = h[:, H1:].astype(jnp.bfloat16)        # head-2 activations

    # ---- Layer 2: per head (different LHS per head). ------------------------
    g1 = jnp.maximum(
        jnp.dot(h1, w2a_ref[...], preferred_element_type=jnp.float32) + b2a_ref[...],
        0.0)
    g2 = jnp.maximum(
        jnp.dot(h2, w2b_ref[...], preferred_element_type=jnp.float32) + b2b_ref[...],
        0.0)

    # ---- Layer 3: single output column per head -> VPU mul + XLU reduce. ----
    w3 = w3_ref[...]                            # [2, H2] f32 (row 0 = head1, row 1 = head2)
    q1 = jnp.sum(g1 * w3[0:1, :], axis=-1, keepdims=True)   # [TB, 1]
    q2 = jnp.sum(g2 * w3[1:2, :], axis=-1, keepdims=True)   # [TB, 1]

    # Lane-dense [TB, 128] output: lane 0 = q1, lane 1 = q2 (biases in b3 row).
    lane = jax.lax.broadcasted_iota(jnp.int32, out_ref.shape, 1)
    out_ref[...] = (jnp.where(lane == 0, q1, jnp.where(lane == 1, q2, 0.0))
                    + b3_ref[...])


def init_critic_params(key, state_dim, action_dim, neurons=(400, 300)):
    """Deterministic init mirroring nn.Linear default: U(-1/sqrt(fan_in), +).

    Weights are [in_features, out_features] (transpose of PyTorch), biases [1, out].
    """
    dims = [
        (state_dim + action_dim, neurons[0]),  # l1
        (neurons[0], neurons[1]),              # l2
        (neurons[1], 1),                       # l3
        (state_dim + action_dim, neurons[0]),  # l4
        (neurons[0], neurons[1]),              # l5
        (neurons[1], 1),                       # l6
    ]
    params = []
    for fan_in, fan_out in dims:
        key, kw, kb = jax.random.split(key, 3)
        bound = 1.0 / jnp.sqrt(jnp.float32(fan_in))
        w = jax.random.uniform(kw, (fan_in, fan_out), jnp.float32, -bound, bound)
        b = jax.random.uniform(kb, (1, fan_out), jnp.float32, -bound, bound)
        params += [w, b]
    return tuple(params)


def pack_critic_params(params, state_dim, action_dim, neurons=(400, 300)):
    """Pad to lane-friendly shapes, fuse both heads, cast matmul weights to bf16."""
    (w1, b1, w2, b2, w3, b3, w4, b4, w5, b5, w6, b6) = params
    n1, n2 = neurons
    H1 = _round_up(n1, 128)          # 400 -> 512
    H2 = _round_up(n2, 128)          # 300 -> 384

    def pad(x, shape):
        out = jnp.zeros(shape, jnp.float32)
        return out.at[:x.shape[0], :x.shape[1]].set(x)

    # Layer 1: fuse both heads along the output axis, split rows state|action.
    w1f = jnp.concatenate([pad(w1, (state_dim + action_dim, H1)),
                           pad(w4, (state_dim + action_dim, H1))], axis=1)
    b1f = jnp.concatenate([pad(b1, (1, H1)), pad(b4, (1, H1))], axis=1)
    w1s = w1f[:state_dim].astype(jnp.bfloat16)     # [state_dim, 2*H1]
    w1a = w1f[state_dim:].astype(jnp.bfloat16)     # [action_dim, 2*H1]

    # Layer 2 (per head), zero-padded, bf16.
    w2a = pad(w2, (H1, H2)).astype(jnp.bfloat16)
    b2a = pad(b2, (1, H2))
    w2b = pad(w5, (H1, H2)).astype(jnp.bfloat16)
    b2b = pad(b5, (1, H2))

    # Layer 3: per-head [1, H2] row vectors (VPU path), kept f32 (tiny: 3 KiB).
    w3v = (jnp.zeros((2, H2), jnp.float32)
           .at[0, :n2].set(w3[:, 0])
           .at[1, :n2].set(w6[:, 0]))
    # Lane-dense bias row: lane 0 = b3, lane 1 = b6, rest zero.
    b3f = (jnp.zeros((1, 128), jnp.float32)
           .at[0, 0].set(b3[0, 0])
           .at[0, 1].set(b6[0, 0]))

    return dict(w1s=w1s, w1a=w1a, b1=b1f,
                w2a=w2a, b2a=b2a, w2b=w2b, b2b=b2b,
                w3=w3v, b3=b3f)


def critic_forward(state, action, packed, *, batch_tile=128):
    """Returns (q1, q2), each [B, 1] float32."""
    B = state.shape[0]
    TB = min(batch_tile, max(8, _round_up(B, 8)))   # batch tile (sublane-aligned)
    Bp = _round_up(B, TB)
    if Bp != B:
        state = jnp.pad(state, ((0, Bp - B), (0, 0)))
        action = jnp.pad(action, ((0, Bp - B), (0, 0)))

    weights = (packed['w1s'], packed['w1a'], packed['b1'],
               packed['w2a'], packed['b2a'], packed['w2b'], packed['b2b'],
               packed['w3'], packed['b3'])

    def const_spec(x):
        # Full-array block, constant index map -> DMA'd once, VMEM-resident
        # across all batch-grid steps.
        nd = x.ndim
        return pl.BlockSpec(x.shape, lambda i, _nd=nd: (0,) * _nd)

    out = pl.pallas_call(
        _critic_kernel,
        grid=(Bp // TB,),
        in_specs=[pl.BlockSpec((TB, state.shape[1]), lambda i: (i, 0)),
                  pl.BlockSpec((TB, action.shape[1]), lambda i: (i, 0))]
                 + [const_spec(w) for w in weights],
        out_specs=pl.BlockSpec((TB, 128), lambda i: (i, 0)),
        out_shape=jax.ShapeDtypeStruct((Bp, 128), jnp.float32),
        compiler_params=pltpu.CompilerParams(
            dimension_semantics=("parallel",),
            vmem_limit_bytes=16 * 1024 * 1024),
    )(state, action, *weights)

    q = out[:B, :2]                 # single lane-dense slice, then split
    return q[:, 0:1], q[:, 1:2]


# ----------------------------- references -----------------------------------
def _reference_f32(state, action, params):
    (w1, b1, w2, b2, w3, b3, w4, b4, w5, b5, w6, b6) = params
    sa = jnp.concatenate([state, action], axis=1)
    h1 = jax.nn.relu(sa @ w1 + b1)
    h1 = jax.nn.relu(h1 @ w2 + b2)
    q1 = h1 @ w3 + b3
    h2 = jax.nn.relu(sa @ w4 + b4)
    h2 = jax.nn.relu(h2 @ w5 + b5)
    q2 = h2 @ w6 + b6
    return q1, q2


def _reference_mirrored(state, action, p):
    """Plain-JAX replica of the kernel math (same dtype handling)."""
    H1 = p['w1s'].shape[1] // 2
    h = (jnp.dot(state, p['w1s'].astype(jnp.float32))
         + jnp.dot(action, p['w1a'].astype(jnp.float32)) + p['b1'])
    h = jnp.maximum(h, 0.0)
    h1 = h[:, :H1].astype(jnp.bfloat16)
    h2 = h[:, H1:].astype(jnp.bfloat16)
    g1 = jnp.maximum(jnp.dot(h1, p['w2a'], preferred_element_type=jnp.float32)
                     + p['b2a'], 0.0)
    g2 = jnp.maximum(jnp.dot(h2, p['w2b'], preferred_element_type=jnp.float32)
                     + p['b2b'], 0.0)
    q1 = jnp.sum(g1 * p['w3'][0:1, :], axis=-1, keepdims=True) + p['b3'][0, 0]
    q2 = jnp.sum(g2 * p['w3'][1:2, :], axis=-1, keepdims=True) + p['b3'][0, 1]
    return q1, q2


if __name__ == "__main__":
    key = jax.random.PRNGKey(0)
    state_dim, action_dim, batch = 8, 4, 2
    neurons = (400, 300)

    k_params, k_state, k_action = jax.random.split(key, 3)
    params = init_critic_params(k_params, state_dim, action_dim, neurons)
    packed = pack_critic_params(params, state_dim, action_dim, neurons)

    state = jax.random.normal(k_state, (batch, state_dim), jnp.float32)
    action = jax.random.normal(k_action, (batch, action_dim), jnp.float32)

    q1, q2 = critic_forward(state, action, packed)
    jax.block_until_ready((q1, q2))

    m1, m2 = _reference_mirrored(state, action, packed)     # same dtype math
    f1, f2 = _reference_f32(state, action, params)          # original f32 math

    assert q1.shape == (batch, 1) and q2.shape == (batch, 1)
    assert jnp.allclose(q1, m1, atol=2e-3, rtol=2e-3), "q1 mismatch vs mirrored ref"
    assert jnp.allclose(q2, m2, atol=2e-3, rtol=2e-3), "q2 mismatch vs mirrored ref"
    assert jnp.allclose(q1, f1, atol=5e-2, rtol=5e-2), "q1 mismatch vs f32 ref"
    assert jnp.allclose(q2, f2, atol=5e-2, rtol=5e-2), "q2 mismatch vs f32 ref"

    print("KERNEL_OK")
</pallas_src>

<mosaic_0001>
module attributes {stable_mosaic.version = 11 : i64} {
  func.func @_critic_kernel(%arg0: i32, %arg1: memref<8x8xf32, #tpu.memory_space<vmem>>, %arg2: memref<8x4xf32, #tpu.memory_space<vmem>>, %arg3: memref<8x1024xbf16, #tpu.memory_space<vmem>>, %arg4: memref<4x1024xbf16, #tpu.memory_space<vmem>>, %arg5: memref<1x1024xf32, #tpu.memory_space<vmem>>, %arg6: memref<512x384xbf16, #tpu.memory_space<vmem>>, %arg7: memref<1x384xf32, #tpu.memory_space<vmem>>, %arg8: memref<512x384xbf16, #tpu.memory_space<vmem>>, %arg9: memref<1x384xf32, #tpu.memory_space<vmem>>, %arg10: memref<2x384xf32, #tpu.memory_space<vmem>>, %arg11: memref<1x128xf32, #tpu.memory_space<vmem>>, %arg12: memref<8x128xf32, #tpu.memory_space<vmem>>) attributes {dimension_semantics = [#tpu.dimension_semantics<parallel>], iteration_bounds = array<i64: 1>, scalar_prefetch = 0 : i64, scratch_operands = 0 : i64, tpu.core_type = #tpu.core_type<tc>, window_params = [{transform_indices = @transform_0, window_bounds = array<i64: 8, 8>}, {transform_indices = @transform_1, window_bounds = array<i64: 8, 4>}, {pipeline_mode = #tpu.pipeline_mode<synchronous>, transform_indices = @transform_2, window_bounds = array<i64: 8, 1024>}, {pipeline_mode = #tpu.pipeline_mode<synchronous>, transform_indices = @transform_3, window_bounds = array<i64: 4, 1024>}, {pipeline_mode = #tpu.pipeline_mode<synchronous>, transform_indices = @transform_4, window_bounds = array<i64: 1, 1024>}, {pipeline_mode = #tpu.pipeline_mode<synchronous>, transform_indices = @transform_5, window_bounds = array<i64: 512, 384>}, {pipeline_mode = #tpu.pipeline_mode<synchronous>, transform_indices = @transform_6, window_bounds = array<i64: 1, 384>}, {pipeline_mode = #tpu.pipeline_mode<synchronous>, transform_indices = @transform_7, window_bounds = array<i64: 512, 384>}, {pipeline_mode = #tpu.pipeline_mode<synchronous>, transform_indices = @transform_8, window_bounds = array<i64: 1, 384>}, {pipeline_mode = #tpu.pipeline_mode<synchronous>, transform_indices = @transform_9, window_bounds = array<i64: 2, 384>}, {pipeline_mode = #tpu.pipeline_mode<synchronous>, transform_indices = @transform_10, window_bounds = array<i64: 1, 128>}, {transform_indices = @transform_11, window_bounds = array<i64: 8, 128>}]} {
    %c0 = arith.constant 0 : index
    %c0_0 = arith.constant 0 : index
    %0 = vector.load %arg1[%c0, %c0_0] : memref<8x8xf32, #tpu.memory_space<vmem>>, vector<8x8xf32>
    %c0_1 = arith.constant 0 : index
    %c0_2 = arith.constant 0 : index
    %1 = vector.load %arg3[%c0_1, %c0_2] : memref<8x1024xbf16, #tpu.memory_space<vmem>>, vector<8x1024xbf16>
    %cst = arith.constant dense<0.000000e+00> : vector<8x1024xf32>
    %2 = tpu.matmul %0, %1, %cst {dimension_numbers = #tpu.dot_dimension_numbers<[1], [0], [0], [1], [0, 0, 1, 1], [], []>} : vector<8x8xf32>, vector<8x1024xbf16>, vector<8x1024xf32> -> vector<8x1024xf32>
    %c0_3 = arith.constant 0 : index
    %c0_4 = arith.constant 0 : index
    %3 = vector.load %arg2[%c0_3, %c0_4] : memref<8x4xf32, #tpu.memory_space<vmem>>, vector<8x4xf32>
    %c0_5 = arith.constant 0 : index
    %c0_6 = arith.constant 0 : index
    %4 = vector.load %arg4[%c0_5, %c0_6] : memref<4x1024xbf16, #tpu.memory_space<vmem>>, vector<4x1024xbf16>
    %cst_7 = arith.constant dense<0.000000e+00> : vector<8x1024xf32>
    %5 = tpu.matmul %3, %4, %cst_7 {dimension_numbers = #tpu.dot_dimension_numbers<[1], [0], [0], [1], [0, 0, 1, 1], [], []>} : vector<8x4xf32>, vector<4x1024xbf16>, vector<8x1024xf32> -> vector<8x1024xf32>
    %6 = arith.addf %2, %5 : vector<8x1024xf32>
    %c0_8 = arith.constant 0 : index
    %c0_9 = arith.constant 0 : index
    %7 = vector.load %arg5[%c0_8, %c0_9] : memref<1x1024xf32, #tpu.memory_space<vmem>>, vector<1x1024xf32>
    %8 = vector.broadcast %7 : vector<1x1024xf32> to vector<8x1024xf32>
    %9 = arith.addf %6, %8 : vector<8x1024xf32>
    %cst_10 = arith.constant 0.000000e+00 : f32
    %10 = vector.broadcast %cst_10 : f32 to vector<8x1024xf32>
    %11 = arith.maximumf %9, %10 : vector<8x1024xf32>
    %12 = vector.extract_strided_slice %11 {offsets = [0, 0], sizes = [8, 512], strides = [1, 1]} : vector<8x1024xf32> to vector<8x512xf32>
    %13 = arith.truncf %12 : vector<8x512xf32> to vector<8x512xbf16>
    %14 = vector.extract_strided_slice %11 {offsets = [0, 512], sizes = [8, 512], strides = [1, 1]} : vector<8x1024xf32> to vector<8x512xf32>
    %15 = arith.truncf %14 : vector<8x512xf32> to vector<8x512xbf16>
    %c0_11 = arith.constant 0 : index
    %c0_12 = arith.constant 0 : index
    %16 = vector.load %arg6[%c0_11, %c0_12] : memref<512x384xbf16, #tpu.memory_space<vmem>>, vector<512x384xbf16>
    %cst_13 = arith.constant dense<0.000000e+00> : vector<8x384xf32>
    %17 = tpu.matmul %13, %16, %cst_13 {dimension_numbers = #tpu.dot_dimension_numbers<[1], [0], [0], [1], [0, 0, 1, 1], [], []>} : vector<8x512xbf16>, vector<512x384xbf16>, vector<8x384xf32> -> vector<8x384xf32>
    %c0_14 = arith.constant 0 : index
    %c0_15 = arith.constant 0 : index
    %18 = vector.load %arg7[%c0_14, %c0_15] : memref<1x384xf32, #tpu.memory_space<vmem>>, vector<1x384xf32>
    %19 = vector.broadcast %18 : vector<1x384xf32> to vector<8x384xf32>
    %20 = arith.addf %17, %19 : vector<8x384xf32>
    %cst_16 = arith.constant 0.000000e+00 : f32
    %21 = vector.broadcast %cst_16 : f32 to vector<8x384xf32>
    %22 = arith.maximumf %20, %21 : vector<8x384xf32>
    %c0_17 = arith.constant 0 : index
    %c0_18 = arith.constant 0 : index
    %23 = vector.load %arg8[%c0_17, %c0_18] : memref<512x384xbf16, #tpu.memory_space<vmem>>, vector<512x384xbf16>
    %cst_19 = arith.constant dense<0.000000e+00> : vector<8x384xf32>
    %24 = tpu.matmul %15, %23, %cst_19 {dimension_numbers = #tpu.dot_dimension_numbers<[1], [0], [0], [1], [0, 0, 1, 1], [], []>} : vector<8x512xbf16>, vector<512x384xbf16>, vector<8x384xf32> -> vector<8x384xf32>
    %c0_20 = arith.constant 0 : index
    %c0_21 = arith.constant 0 : index
    %25 = vector.load %arg9[%c0_20, %c0_21] : memref<1x384xf32, #tpu.memory_space<vmem>>, vector<1x384xf32>
    %26 = vector.broadcast %25 : vector<1x384xf32> to vector<8x384xf32>
    %27 = arith.addf %24, %26 : vector<8x384xf32>
    %cst_22 = arith.constant 0.000000e+00 : f32
    %28 = vector.broadcast %cst_22 : f32 to vector<8x384xf32>
    %29 = arith.maximumf %27, %28 : vector<8x384xf32>
    %c0_23 = arith.constant 0 : index
    %c0_24 = arith.constant 0 : index
    %30 = vector.load %arg10[%c0_23, %c0_24] : memref<2x384xf32, #tpu.memory_space<vmem>>, vector<2x384xf32>
    %31 = vector.extract_strided_slice %30 {offsets = [0, 0], sizes = [1, 384], strides = [1, 1]} : vector<2x384xf32> to vector<1x384xf32>
    %32 = vector.broadcast %31 : vector<1x384xf32> to vector<8x384xf32>
    %33 = arith.mulf %22, %32 : vector<8x384xf32>
    %cst_25 = arith.constant dense<0.000000e+00> : vector<8xf32>
    %34 = vector.multi_reduction <add>, %33, %cst_25 [1] : vector<8x384xf32> to vector<8xf32>
    %35 = vector.shape_cast %34 : vector<8xf32> to vector<8x1xf32>
    %36 = vector.extract_strided_slice %30 {offsets = [1, 0], sizes = [1, 384], strides = [1, 1]} : vector<2x384xf32> to vector<1x384xf32>
    %37 = vector.broadcast %36 : vector<1x384xf32> to vector<8x384xf32>
    %38 = arith.mulf %29, %37 : vector<8x384xf32>
    %cst_26 = arith.constant dense<0.000000e+00> : vector<8xf32>
    %39 = vector.multi_reduction <add>, %38, %cst_26 [1] : vector<8x384xf32> to vector<8xf32>
    %40 = vector.shape_cast %39 : vector<8xf32> to vector<8x1xf32>
    %41 = tpu.iota {dimensions = array<i32: 1>} : vector<8x128xi32>
    %c0_i32 = arith.constant 0 : i32
    %42 = vector.broadcast %c0_i32 : i32 to vector<8x128xi32>
    %43 = arith.cmpi eq, %41, %42 : vector<8x128xi32>
    %c1_i32 = arith.constant 1 : i32
    %44 = vector.broadcast %c1_i32 : i32 to vector<8x128xi32>
    %45 = arith.cmpi eq, %41, %44 : vector<8x128xi32>
    %cst_27 = arith.constant 0.000000e+00 : f32
    %46 = vector.shape_cast %40 : vector<8x1xf32> to vector<8x1xf32>
    %47 = vector.broadcast %46 : vector<8x1xf32> to vector<8x128xf32>
    %48 = vector.broadcast %cst_27 : f32 to vector<8x128xf32>
    %49 = arith.select %45, %47, %48 : vector<8x128xi1>, vector<8x128xf32>
    %50 = vector.shape_cast %35 : vector<8x1xf32> to vector<8x1xf32>
    %51 = vector.broadcast %50 : vector<8x1xf32> to vector<8x128xf32>
    %52 = arith.select %43, %51, %49 : vector<8x128xi1>, vector<8x128xf32>
    %c0_28 = arith.constant 0 : index
    %c0_29 = arith.constant 0 : index
    %53 = vector.load %arg11[%c0_28, %c0_29] : memref<1x128xf32, #tpu.memory_space<vmem>>, vector<1x128xf32>
    %54 = vector.broadcast %53 : vector<1x128xf32> to vector<8x128xf32>
    %55 = arith.addf %52, %54 : vector<8x128xf32>
    %c0_30 = arith.constant 0 : index
    %c0_31 = arith.constant 0 : index
    %56 = vector.load %arg12[%c0_30, %c0_31] : memref<8x128xf32, #tpu.memory_space<vmem>>, vector<8x128xf32>
    tpu.vector_store %arg12[%c0_30, %c0_31], %55 {strides = array<i32>} : memref<8x128xf32, #tpu.memory_space<vmem>>, vector<8x128xf32>,
    return
  }
  func.func @transform_0(%arg0: i32) -> (i32, i32) {
    %c0_i32 = arith.constant 0 : i32
    %c0_i32_0 = arith.constant 0 : i32
    return %arg0, %c0_i32 : i32, i32
  }
  func.func @transform_1(%arg0: i32) -> (i32, i32) {
    %c0_i32 = arith.constant 0 : i32
    %c0_i32_0 = arith.constant 0 : i32
    return %arg0, %c0_i32 : i32, i32
  }
  func.func @transform_2(%arg0: i32) -> (i32, i32) {
    %c0_i32 = arith.constant 0 : i32
    %c0_i32_0 = arith.constant 0 : i32
    %c0_i32_1 = arith.constant 0 : i32
    return %c0_i32, %c0_i32_0 : i32, i32
  }
  func.func @transform_3(%arg0: i32) -> (i32, i32) {
    %c0_i32 = arith.constant 0 : i32
    %c0_i32_0 = arith.constant 0 : i32
    %c0_i32_1 = arith.constant 0 : i32
    return %c0_i32, %c0_i32_0 : i32, i32
  }
  func.func @transform_4(%arg0: i32) -> (i32, i32) {
    %c0_i32 = arith.constant 0 : i32
    %c0_i32_0 = arith.constant 0 : i32
    %c0_i32_1 = arith.constant 0 : i32
    return %c0_i32, %c0_i32_0 : i32, i32
  }
  func.func @transform_5(%arg0: i32) -> (i32, i32) {
    %c0_i32 = arith.constant 0 : i32
    %c0_i32_0 = arith.constant 0 : i32
    %c0_i32_1 = arith.constant 0 : i32
    return %c0_i32, %c0_i32_0 : i32, i32
  }
  func.func @transform_6(%arg0: i32) -> (i32, i32) {
    %c0_i32 = arith.constant 0 : i32
    %c0_i32_0 = arith.constant 0 : i32
    %c0_i32_1 = arith.constant 0 : i32
    return %c0_i32, %c0_i32_0 : i32, i32
  }
  func.func @transform_7(%arg0: i32) -> (i32, i32) {
    %c0_i32 = arith.constant 0 : i32
    %c0_i32_0 = arith.constant 0 : i32
    %c0_i32_1 = arith.constant 0 : i32
    return %c0_i32, %c0_i32_0 : i32, i32
  }
  func.func @transform_8(%arg0: i32) -> (i32, i32) {
    %c0_i32 = arith.constant 0 : i32
    %c0_i32_0 = arith.constant 0 : i32
    %c0_i32_1 = arith.constant 0 : i32
    return %c0_i32, %c0_i32_0 : i32, i32
  }
  func.func @transform_9(%arg0: i32) -> (i32, i32) {
    %c0_i32 = arith.constant 0 : i32
    %c0_i32_0 = arith.constant 0 : i32
    %c0_i32_1 = arith.constant 0 : i32
    return %c0_i32, %c0_i32_0 : i32, i32
  }
  func.func @transform_10(%arg0: i32) -> (i32, i32) {
    %c0_i32 = arith.constant 0 : i32
    %c0_i32_0 = arith.constant 0 : i32
    %c0_i32_1 = arith.constant 0 : i32
    return %c0_i32, %c0_i32_0 : i32, i32
  }
  func.func @transform_11(%arg0: i32) -> (i32, i32) {
    %c0_i32 = arith.constant 0 : i32
    %c0_i32_0 = arith.constant 0 : i32
    return %arg0, %c0_i32 : i32, i32
  }
}

</mosaic_0001>

<llo_original>
// kernel: tpu_custom_call.1
$region0: #{tpu_custom_call.1}
  #allocation0 [shape = 'u32[]', space=smem, size = 0x4, offset = 0x4, fixed_abs, tag = 'smem constant byte address 0x4 - core index']
  #allocation1 [shape = 'u32[144,128]{1,0:T(1,128)}', space=vmem, size = 0x12000, scoped, tag = 'internal scratch']
  %s0 = inlined_call_operand.hbm [shape: f32[8,8], index: 0, kind: input, shape index: {}]
  %s1 = inlined_call_operand.vmem [shape: f32[8,4], index: 1, kind: input, shape index: {}]
  %s2 = inlined_call_operand.hbm [shape: bf16[8,1024], index: 2, kind: input, shape index: {}]
  %s3 = inlined_call_operand.vmem [shape: bf16[4,1024], index: 3, kind: input, shape index: {}]
  %s4 = inlined_call_operand.vmem [shape: f32[1,1024], index: 4, kind: input, shape index: {}]
  %s5 = inlined_call_operand.hbm [shape: bf16[512,384], index: 5, kind: input, shape index: {}]
  %s6 = inlined_call_operand.vmem [shape: f32[1,384], index: 6, kind: input, shape index: {}]
  %s7 = inlined_call_operand.hbm [shape: bf16[512,384], index: 7, kind: input, shape index: {}]
  %s8 = inlined_call_operand.vmem [shape: f32[1,384], index: 8, kind: input, shape index: {}]
  %s9 = inlined_call_operand.vmem [shape: f32[2,384], index: 9, kind: input, shape index: {}]
  %s10 = inlined_call_operand.vmem [shape: f32[1,128], index: 10, kind: input, shape index: {}]
  %s11 = inlined_call_operand.hbm [shape: f32[8,128], index: 11, kind: output, shape index: {}]
  %s12 = sld [smem:[#allocation0]]
  $region70: #{tpu_custom_call.1} parent=0
    _
  %s14 = ssub.s32 1, %s12
  %s15 = scalar_select 0, %s14, %s12
  $region1: #{tpu_custom_call.1} parent=0
    #allocation2 [shape = 'u8[4096]{0}', space=vmem, size = 0x1000, scoped, tag = 'input window, operand 0, single buffered']
    #allocation3 [shape = 's32[1]{0}', space=sflag, size = 0x4, scoped, tag = 'scoped memory for tpu_custom_call.1']
    #allocation4 [shape = 's32[1]{0}', space=sflag, size = 0x4, scoped, tag = 'scoped memory for tpu_custom_call.1']
    #allocation5 [shape = 'u8[16384]{0}', space=vmem, size = 0x4000, scoped, tag = 'input window, operand 2, single buffered']
    #allocation6 [shape = 's32[1]{0}', space=sflag, size = 0x4, scoped, tag = 'scoped memory for tpu_custom_call.1']
    #allocation7 [shape = 'u8[393216]{0}', space=vmem, size = 0x60000, scoped, tag = 'input window, operand 5, single buffered']
    #allocation8 [shape = 'u8[393216]{0}', space=vmem, size = 0x60000, scoped, tag = 'input window, operand 7, single buffered']
    #allocation9 [shape = 's32[1]{0}', space=sflag, size = 0x4, scoped, tag = 'scoped memory for tpu_custom_call.1']
    #allocation10 [shape = 'u8[4096]{0}', space=vmem, size = 0x1000, scoped, tag = 'output window, operand 0, single buffered']
    %16 = vsyncpa [#allocation3], 0
    %17 = vsyncpa [#allocation6], 0
    %18 = vsyncpa [#allocation9], 0
    %19 = vsyncpa [#allocation4], 0
    // Predicated region
    $region2: #{tpu_custom_call.1} parent=1 // pred_check
      _
    $region3: #{tpu_custom_call.1} parent=1 // pred_check_branch
      %21 = sbr.rel (0) target = $region5
    $region4: #{tpu_custom_call.1} parent=1 // pred_region
      %s23 = ssub.s32 128, 128
      %24 = vsyncadd [#allocation3], %s23
      %s26 = sshll.u32 [#allocation2], 4
      %s27 = int_to_ptr.vmem [resolvable:$true] %s26
      %29 = dma.hbm_to_vmem [thread:$0]  %s0, 128, %s27, [#allocation3]
    $region5: #{tpu_custom_call.1} parent=1 // pred_fallthru
      _
    // Predicated region
    $region6: #{tpu_custom_call.1} parent=1 // pred_check
      _
    $region7: #{tpu_custom_call.1} parent=1 // pred_check_branch
      %31 = sbr.rel (0) target = $region9
    $region8: #{tpu_custom_call.1} parent=1 // pred_region
      _
    $region9: #{tpu_custom_call.1} parent=1 // pred_fallthru
      _
    // Predicated region
    $region10: #{tpu_custom_call.1} parent=1 // pred_check
      _
    $region11: #{tpu_custom_call.1} parent=1 // pred_check_branch
      %33 = sbr.rel (0) target = $region13
    $region12: #{tpu_custom_call.1} parent=1 // pred_region
      %s35 = ssub.s32 512, 512
      %36 = vsyncadd [#allocation6], %s35
      %s38 = sshll.u32 [#allocation5], 4
      %s39 = int_to_ptr.vmem [resolvable:$true] %s38
      %41 = dma.hbm_to_vmem [thread:$0]  %s2, 512, %s39, [#allocation6]
    $region13: #{tpu_custom_call.1} parent=1 // pred_fallthru
      _
    // Predicated region
    $region14: #{tpu_custom_call.1} parent=1 // pred_check
      _
    $region15: #{tpu_custom_call.1} parent=1 // pred_check_branch
      %43 = sbr.rel (0) target = $region17
    $region16: #{tpu_custom_call.1} parent=1 // pred_region
      _
    $region17: #{tpu_custom_call.1} parent=1 // pred_fallthru
      _
    // Predicated region
    $region18: #{tpu_custom_call.1} parent=1 // pred_check
      _
    $region19: #{tpu_custom_call.1} parent=1 // pred_check_branch
      %45 = sbr.rel (0) target = $region21
    $region20: #{tpu_custom_call.1} parent=1 // pred_region
      _
    $region21: #{tpu_custom_call.1} parent=1 // pred_fallthru
      _
    // Predicated region
    $region22: #{tpu_custom_call.1} parent=1 // pred_check
      _
    $region23: #{tpu_custom_call.1} parent=1 // pred_check_branch
      %47 = sbr.rel (0) target = $region25
    $region24: #{tpu_custom_call.1} parent=1 // pred_region
      %s49 = ssub.s32 12288, 12288
      %50 = vsyncadd [#allocation6], %s49
      %s51 = sshll.u32 [#allocation7], 4
      %s52 = int_to_ptr.vmem [resolvable:$true] %s51
      %57 = dma.hbm_to_vmem [thread:$0]  %s5, 12288, %s52, [#allocation6], 192, 192, 12
    $region25: #{tpu_custom_call.1} parent=1 // pred_fallthru
      _
    // Predicated region
    $region26: #{tpu_custom_call.1} parent=1 // pred_check
      _
    $region27: #{tpu_custom_call.1} parent=1 // pred_check_branch
      %59 = sbr.rel (0) target = $region29
    $region28: #{tpu_custom_call.1} parent=1 // pred_region
      _
    $region29: #{tpu_custom_call.1} parent=1 // pred_fallthru
      _
    // Predicated region
    $region30: #{tpu_custom_call.1} parent=1 // pred_check
      _
    $region31: #{tpu_custom_call.1} parent=1 // pred_check_branch
      %61 = sbr.rel (0) target = $region33
    $region32: #{tpu_custom_call.1} parent=1 // pred_region
      %s63 = ssub.s32 12288, 12288
      %64 = vsyncadd [#allocation9], %s63
      %s65 = sshll.u32 [#allocation8], 4
      %s66 = int_to_ptr.vmem [resolvable:$true] %s65
      %71 = dma.hbm_to_vmem [thread:$0]  %s7, 12288, %s66, [#allocation9], 192, 192, 12
    $region33: #{tpu_custom_call.1} parent=1 // pred_fallthru
      _
    // Predicated region
    $region34: #{tpu_custom_call.1} parent=1 // pred_check
      _
    $region35: #{tpu_custom_call.1} parent=1 // pred_check_branch
      %73 = sbr.rel (0) target = $region37
    $region36: #{tpu_custom_call.1} parent=1 // pred_region
      _
    $region37: #{tpu_custom_call.1} parent=1 // pred_fallthru
      _
    // Predicated region
    $region38: #{tpu_custom_call.1} parent=1 // pred_check
      _
    $region39: #{tpu_custom_call.1} parent=1 // pred_check_branch
      %75 = sbr.rel (0) target = $region41
    $region40: #{tpu_custom_call.1} parent=1 // pred_region
      _
    $region41: #{tpu_custom_call.1} parent=1 // pred_fallthru
      _
    // Predicated region
    $region42: #{tpu_custom_call.1} parent=1 // pred_check
      _
    $region43: #{tpu_custom_call.1} parent=1 // pred_check_branch
      %77 = sbr.rel (0) target = $region45
    $region44: #{tpu_custom_call.1} parent=1 // pred_region
      _
    $region45: #{tpu_custom_call.1} parent=1 // pred_fallthru
      _
    // Predicated region
    $region46: #{tpu_custom_call.1} parent=1 // pred_check
      _
    $region47: #{tpu_custom_call.1} parent=1 // pred_check_branch
      %79 = sbr.rel (0) target = $region49
    $region48: #{tpu_custom_call.1} parent=1 // pred_region
      %80 = dma.done [#allocation3], 128
    $region49: #{tpu_custom_call.1} parent=1 // pred_fallthru
      _
    // Predicated region
    $region50: #{tpu_custom_call.1} parent=1 // pred_check
      _
    $region51: #{tpu_custom_call.1} parent=1 // pred_check_branch
      %82 = sbr.rel (0) target = $region53
    $region52: #{tpu_custom_call.1} parent=1 // pred_region
      %83 = dma.done [#allocation6], 512
    $region53: #{tpu_custom_call.1} parent=1 // pred_fallthru
      _
    // Predicated region
    $region54: #{tpu_custom_call.1} parent=1 // pred_check
      _
    $region55: #{tpu_custom_call.1} parent=1 // pred_check_branch
      %85 = sbr.rel (0) target = $region57
    $region56: #{tpu_custom_call.1} parent=1 // pred_region
      %86 = dma.done [#allocation6], 12288
    $region57: #{tpu_custom_call.1} parent=1 // pred_fallthru
      _
    // Predicated region
    $region58: #{tpu_custom_call.1} parent=1 // pred_check
      _
    $region59: #{tpu_custom_call.1} parent=1 // pred_check_branch
      %88 = sbr.rel (0) target = $region61
    $region60: #{tpu_custom_call.1} parent=1 // pred_region
      %89 = dma.done [#allocation9], 12288
    $region61: #{tpu_custom_call.1} parent=1 // pred_fallthru
      _
    %v91 = vld [vmem:[#allocation2] sm:$0xff]
    %v92 = vld [vmem:[#allocation5] sm:$0xff]
    %v93 = vld [vmem:[#allocation5 + $0x8] sm:$0xff]
    %v94 = vld [vmem:[#allocation5 + $0x10] sm:$0xff]
    %v95 = vld [vmem:[#allocation5 + $0x18] sm:$0xff]
    %v96 = vld [vmem:[%s1] sm:$0xff]
    %v97 = vld [vmem:[%s3] sm:$0xff]
    %v98 = vld [vmem:[%s3 + $0x8] sm:$0xff]
    %v101 = vcombine.high %v97, %v97
    %v103 = vunpack.c.l.s4 1983009808
    %v104 = vunpack.c.0.s8 %v103
    %v105 = vlaneseq
    %v106 = vshrl.u32 %v105, 7
    %v107 = vsub.s32 %v104, %v106
    %v108 = vrot.slane %v97, %v107
    %v110 = vunpack.c.l.s4 1983009808
    %v111 = vunpack.c.0.s8 %v110
    %v112 = vlaneseq
    %v113 = vshrl.u32 %v112, 7
    %v114 = vsub.s32 %v111, %v113
    %v115 = vrot.slane %v101, %v114
    %v116 = vcombine.high %v108, %v108
    %v117 = vcombine.high %v115, %v115
    %v118 = vcombine.high %v98, %v98
    %v120 = vunpack.c.l.s4 1983009808
    %v121 = vunpack.c.0.s8 %v120
    %v122 = vlaneseq
    %v123 = vshrl.u32 %v122, 7
    %v124 = vsub.s32 %v121, %v123
    %v125 = vrot.slane %v98, %v124
    %v127 = vunpack.c.l.s4 1983009808
    %v128 = vunpack.c.0.s8 %v127
    %v129 = vlaneseq
    %v130 = vshrl.u32 %v129, 7
    %v131 = vsub.s32 %v128, %v130
    %v132 = vrot.slane %v118, %v131
    %v133 = vcombine.high %v125, %v125
    %v134 = vcombine.high %v132, %v132
    %vm135 = vcmask 31744
    %v137 = vsel %vm135, %v96, 0
    %vm139 = vcmask 1041408
    %v141 = vsel %vm139, %v108, 0
    %v144 = vsel %vm139, %v116, 0
    %v147 = vsel %vm139, %v115, 0
    %v150 = vsel %vm139, %v117, 0
    %v153 = vsel %vm139, %v125, 0
    %v156 = vsel %vm139, %v133, 0
    %v159 = vsel %vm139, %v132, 0
    %v162 = vsel %vm139, %v134, 0
    %164 = vmatprep.subr.bf16.mxu0 %v144
    %165 = vmatpush1.bf16.msra.mxu0 %v141
    %166 = vmatprep.subr.bf16.mxu0 0
    %167 = vmatpush1.bf16.msra.mxu0 0
    %168 = vmatprep.subr.bf16.mxu0 0
    %169 = vmatpush1.bf16.msra.mxu0 0
    %170 = vmatprep.subr.bf16.mxu0 0
    %171 = vmatpush1.bf16.msra.mxu0 0
    %172 = vmatprep.subr.bf16.mxu0 0
    %173 = vmatpush1.bf16.msra.mxu0 0
    %174 = vmatprep.subr.bf16.mxu0 0
    %175 = vmatpush1.bf16.msra.mxu0 0
    %176 = vmatprep.subr.bf16.mxu0 0
    %177 = vmatpush1.bf16.msra.mxu0 0
    %178 = vmatprep.subr.bf16.mxu0 0
    %179 = vmatpush1.bf16.msra.mxu0 0
    %180 = vmatprep.subr.bf16.mxu0 0
    %181 = vmatpush1.bf16.msra.mxu0 0
    %182 = vmatprep.subr.bf16.mxu0 0
    %183 = vmatpush1.bf16.msra.mxu0 0
    %184 = vmatprep.subr.bf16.mxu0 0
    %185 = vmatpush1.bf16.msra.mxu0 0
    %186 = vmatprep.subr.bf16.mxu0 0
    %187 = vmatpush1.bf16.msra.mxu0 0
    %188 = vmatprep.subr.bf16.mxu0 0
    %189 = vmatpush1.bf16.msra.mxu0 0
    %190 = vmatprep.subr.bf16.mxu0 0
    %191 = vmatpush1.bf16.msra.mxu0 0
    %192 = vmatprep.subr.bf16.mxu0 0
    %193 = vmatpush1.bf16.msra.mxu0 0
    %194 = vmatprep.subr.bf16.mxu0 0
    %195 = vmatpush1.bf16.msra.mxu0 0
    %196 = vmatprep.mubr.f32.mxu0 0.0
    %197 = vmatmul.mubr.f32.gmra.mrb[0].mxu0 %v137
    %v198 = vpop.f32.mrb[0].mxu0
    %v199 = vadd.f32 0.0, %v198
    %v200 = vpop.f32.mrb[0].mxu0
    %v201 = vadd.f32 0.0, %v200
    %202 = vdwg.mxu0
    %203 = vmatprep.subr.bf16.mxu0 %v150
    %204 = vmatpush1.bf16.msra.mxu0 %v147
    %205 = vmatprep.subr.bf16.mxu0 0
    %206 = vmatpush1.bf16.msra.mxu0 0
    %207 = vmatprep.subr.bf16.mxu0 0
    %208 = vmatpush1.bf16.msra.mxu0 0
    %209 = vmatprep.subr.bf16.mxu0 0
    %210 = vmatpush1.bf16.msra.mxu0 0
    %211 = vmatprep.subr.bf16.mxu0 0
    %212 = vmatpush1.bf16.msra.mxu0 0
    %213 = vmatprep.subr.bf16.mxu0 0
    %214 = vmatpush1.bf16.msra.mxu0 0
    %215 = vmatprep.subr.bf16.mxu0 0
    %216 = vmatpush1.bf16.msra.mxu0 0
    %217 = vmatprep.subr.bf16.mxu0 0
    %218 = vmatpush1.bf16.msra.mxu0 0
    %219 = vmatprep.subr.bf16.mxu0 0
    %220 = vmatpush1.bf16.msra.mxu0 0
    %221 = vmatprep.subr.bf16.mxu0 0
    %222 = vmatpush1.bf16.msra.mxu0 0
    %223 = vmatprep.subr.bf16.mxu0 0
    %224 = vmatpush1.bf16.msra.mxu0 0
    %225 = vmatprep.subr.bf16.mxu0 0
    %226 = vmatpush1.bf16.msra.mxu0 0
    %227 = vmatprep.subr.bf16.mxu0 0
    %228 = vmatpush1.bf16.msra.mxu0 0
    %229 = vmatprep.subr.bf16.mxu0 0
    %230 = vmatpush1.bf16.msra.mxu0 0
    %231 = vmatprep.subr.bf16.mxu0 0
    %232 = vmatpush1.bf16.msra.mxu0 0
    %233 = vmatprep.subr.bf16.mxu0 0
    %234 = vmatpush1.bf16.msra.mxu0 0
    %235 = vmatprep.mubr.f32.mxu0 0.0
    %236 = vmatmul.mubr.f32.gmra.mrb[0].mxu0 %v137
    %v237 = vpop.f32.mrb[0].mxu0
    %v238 = vadd.f32 0.0, %v237
    %v239 = vpop.f32.mrb[0].mxu0
    %v240 = vadd.f32 0.0, %v239
    %241 = vdwg.mxu0
    %242 = vmatprep.subr.bf16.mxu0 %v156
    %243 = vmatpush1.bf16.msra.mxu0 %v153
    %244 = vmatprep.subr.bf16.mxu0 0
    %245 = vmatpush1.bf16.msra.mxu0 0
    %246 = vmatprep.subr.bf16.mxu0 0
    %247 = vmatpush1.bf16.msra.mxu0 0
    %248 = vmatprep.subr.bf16.mxu0 0
    %249 = vmatpush1.bf16.msra.mxu0 0
    %250 = vmatprep.subr.bf16.mxu0 0
    %251 = vmatpush1.bf16.msra.mxu0 0
    %252 = vmatprep.subr.bf16.mxu0 0
    %253 = vmatpush1.bf16.msra.mxu0 0
    %254 = vmatprep.subr.bf16.mxu0 0
    %255 = vmatpush1.bf16.msra.mxu0 0
    %256 = vmatprep.subr.bf16.mxu0 0
    %257 = vmatpush1.bf16.msra.mxu0 0
    %258 = vmatprep.subr.bf16.mxu0 0
    %259 = vmatpush1.bf16.msra.mxu0 0
    %260 = vmatprep.subr.bf16.mxu0 0
    %261 = vmatpush1.bf16.msra.mxu0 0
    %262 = vmatprep.subr.bf16.mxu0 0
    %263 = vmatpush1.bf16.msra.mxu0 0
    %264 = vmatprep.subr.bf16.mxu0 0
    %265 = vmatpush1.bf16.msra.mxu0 0
    %266 = vmatprep.subr.bf16.mxu0 0
    %267 = vmatpush1.bf16.msra.mxu0 0
    %268 = vmatprep.subr.bf16.mxu0 0
    %269 = vmatpush1.bf16.msra.mxu0 0
    %270 = vmatprep.subr.bf16.mxu0 0
    %271 = vmatpush1.bf16.msra.mxu0 0
    %272 = vmatprep.subr.bf16.mxu0 0
    %273 = vmatpush1.bf16.msra.mxu0 0
    %274 = vmatprep.mubr.f32.mxu0 0.0
    %275 = vmatmul.mubr.f32.gmra.mrb[0].mxu0 %v137
    %v276 = vpop.f32.mrb[0].mxu0
    %v277 = vadd.f32 0.0, %v276
    %v278 = vpop.f32.mrb[0].mxu0
    %v279 = vadd.f32 0.0, %v278
    %280 = vdwg.mxu0
    %281 = vmatprep.subr.bf16.mxu0 %v162
    %282 = vmatpush1.bf16.msra.mxu0 %v159
    %283 = vmatprep.subr.bf16.mxu0 0
    %284 = vmatpush1.bf16.msra.mxu0 0
    %285 = vmatprep.subr.bf16.mxu0 0
    %286 = vmatpush1.bf16.msra.mxu0 0
    %287 = vmatprep.subr.bf16.mxu0 0
    %288 = vmatpush1.bf16.msra.mxu0 0
    %289 = vmatprep.subr.bf16.mxu0 0
    %290 = vmatpush1.bf16.msra.mxu0 0
    %291 = vmatprep.subr.bf16.mxu0 0
    %292 = vmatpush1.bf16.msra.mxu0 0
    %293 = vmatprep.subr.bf16.mxu0 0
    %294 = vmatpush1.bf16.msra.mxu0 0
    %295 = vmatprep.subr.bf16.mxu0 0
    %296 = vmatpush1.bf16.msra.mxu0 0
    %297 = vmatprep.subr.bf16.mxu0 0
    %298 = vmatpush1.bf16.msra.mxu0 0
    %299 = vmatprep.subr.bf16.mxu0 0
    %300 = vmatpush1.bf16.msra.mxu0 0
    %301 = vmatprep.subr.bf16.mxu0 0
    %302 = vmatpush1.bf16.msra.mxu0 0
    %303 = vmatprep.subr.bf16.mxu0 0
    %304 = vmatpush1.bf16.msra.mxu0 0
    %305 = vmatprep.subr.bf16.mxu0 0
    %306 = vmatpush1.bf16.msra.mxu0 0
    %307 = vmatprep.subr.bf16.mxu0 0
    %308 = vmatpush1.bf16.msra.mxu0 0
    %309 = vmatprep.subr.bf16.mxu0 0
    %310 = vmatpush1.bf16.msra.mxu0 0
    %311 = vmatprep.subr.bf16.mxu0 0
    %312 = vmatpush1.bf16.msra.mxu0 0
    %313 = vmatprep.mubr.f32.mxu0 0.0
    %314 = vmatmul.mubr.f32.gmra.mrb[0].mxu0 %v137
    %v315 = vpop.f32.mrb[0].mxu0
    %v316 = vadd.f32 0.0, %v315
    %v317 = vpop.f32.mrb[0].mxu0
    %v318 = vadd.f32 0.0, %v317
    %319 = vdwg.mxu0
    %v324 = vunpack.c.l.b16 %v92
    %v325 = vunpack.c.h.b16 %v92
    %v326 = vunpack.c.l.b16 %v93
    %v327 = vunpack.c.h.b16 %v93
    %v328 = vunpack.c.l.b16 %v94
    %v329 = vunpack.c.h.b16 %v94
    %v330 = vunpack.c.l.b16 %v95
    %v331 = vunpack.c.h.b16 %v95
    %v332 = vpack.c.b16 %v324, %v324
    %v333 = vpack.c.b16 %v325, %v325
    %v334 = vpack.c.b16 %v326, %v326
    %v335 = vpack.c.b16 %v327, %v327
    %v336 = vpack.c.b16 %v328, %v328
    %v337 = vpack.c.b16 %v329, %v329
    %v338 = vpack.c.b16 %v330, %v330
    %v339 = vpack.c.b16 %v331, %v331
    %vm340 = vcmask 64512
    %v342 = vsel %vm340, %v91, 0
    %vm344 = vcmask 1043456
    %v346 = vsel %vm344, %v332, 0
    %v349 = vsel %vm344, %v333, 0
    %v352 = vsel %vm344, %v334, 0
    %v355 = vsel %vm344, %v335, 0
    %v358 = vsel %vm344, %v336, 0
    %v361 = vsel %vm344, %v337, 0
    %v364 = vsel %vm344, %v338, 0
    %v367 = vsel %vm344, %v339, 0
    %369 = vmatprep.subr.bf16.mxu0 %v349
    %370 = vmatpush1.bf16.msra.mxu0 %v346
    %371 = vmatprep.subr.bf16.mxu0 0
    %372 = vmatpush1.bf16.msra.mxu0 0
    %373 = vmatprep.subr.bf16.mxu0 0
    %374 = vmatpush1.bf16.msra.mxu0 0
    %375 = vmatprep.subr.bf16.mxu0 0
    %376 = vmatpush1.bf16.msra.mxu0 0
    %377 = vmatprep.subr.bf16.mxu0 0
    %378 = vmatpush1.bf16.msra.mxu0 0
    %379 = vmatprep.subr.bf16.mxu0 0
    %380 = vmatpush1.bf16.msra.mxu0 0
    %381 = vmatprep.subr.bf16.mxu0 0
    %382 = vmatpush1.bf16.msra.mxu0 0
    %383 = vmatprep.subr.bf16.mxu0 0
    %384 = vmatpush1.bf16.msra.mxu0 0
    %385 = vmatprep.subr.bf16.mxu0 0
    %386 = vmatpush1.bf16.msra.mxu0 0
    %387 = vmatprep.subr.bf16.mxu0 0
    %388 = vmatpush1.bf16.msra.mxu0 0
    %389 = vmatprep.subr.bf16.mxu0 0
    %390 = vmatpush1.bf16.msra.mxu0 0
    %391 = vmatprep.subr.bf16.mxu0 0
    %392 = vmatpush1.bf16.msra.mxu0 0
    %393 = vmatprep.subr.bf16.mxu0 0
    %394 = vmatpush1.bf16.msra.mxu0 0
    %395 = vmatprep.subr.bf16.mxu0 0
    %396 = vmatpush1.bf16.msra.mxu0 0
    %397 = vmatprep.subr.bf16.mxu0 0
    %398 = vmatpush1.bf16.msra.mxu0 0
    %399 = vmatprep.subr.bf16.mxu0 0
    %400 = vmatpush1.bf16.msra.mxu0 0
    %401 = vmatprep.mubr.f32.mxu0 0.0
    %402 = vmatmul.mubr.f32.gmra.mrb[0].mxu0 %v342
    %v403 = vpop.f32.mrb[0].mxu0
    %v404 = vadd.f32 %v199, %v403
    %v405 = vpop.f32.mrb[0].mxu0
    %v406 = vadd.f32 %v201, %v405
    %407 = vdwg.mxu0
    %408 = vmatprep.subr.bf16.mxu0 %v355
    %409 = vmatpush1.bf16.msra.mxu0 %v352
    %410 = vmatprep.subr.bf16.mxu0 0
    %411 = vmatpush1.bf16.msra.mxu0 0
    %412 = vmatprep.subr.bf16.mxu0 0
    %413 = vmatpush1.bf16.msra.mxu0 0
    %414 = vmatprep.subr.bf16.mxu0 0
    %415 = vmatpush1.bf16.msra.mxu0 0
    %416 = vmatprep.subr.bf16.mxu0 0
    %417 = vmatpush1.bf16.msra.mxu0 0
    %418 = vmatprep.subr.bf16.mxu0 0
    %419 = vmatpush1.bf16.msra.mxu0 0
    %420 = vmatprep.subr.bf16.mxu0 0
    %421 = vmatpush1.bf16.msra.mxu0 0
    %422 = vmatprep.subr.bf16.mxu0 0
    %423 = vmatpush1.bf16.msra.mxu0 0
    %424 = vmatprep.subr.bf16.mxu0 0
    %425 = vmatpush1.bf16.msra.mxu0 0
    %426 = vmatprep.subr.bf16.mxu0 0
    %427 = vmatpush1.bf16.msra.mxu0 0
    %428 = vmatprep.subr.bf16.mxu0 0
    %429 = vmatpush1.bf16.msra.mxu0 0
    %430 = vmatprep.subr.bf16.mxu0 0
    %431 = vmatpush1.bf16.msra.mxu0 0
    %432 = vmatprep.subr.bf16.mxu0 0
    %433 = vmatpush1.bf16.msra.mxu0 0
    %434 = vmatprep.subr.bf16.mxu0 0
    %435 = vmatpush1.bf16.msra.mxu0 0
    %436 = vmatprep.subr.bf16.mxu0 0
    %437 = vmatpush1.bf16.msra.mxu0 0
    %438 = vmatprep.subr.bf16.mxu0 0
    %439 = vmatpush1.bf16.msra.mxu0 0
    %440 = vmatprep.mubr.f32.mxu0 0.0
    %441 = vmatmul.mubr.f32.gmra.mrb[0].mxu0 %v342
    %v442 = vpop.f32.mrb[0].mxu0
    %v443 = vadd.f32 %v238, %v442
    %v444 = vpop.f32.mrb[0].mxu0
    %v445 = vadd.f32 %v240, %v444
    %446 = vdwg.mxu0
    %447 = vmatprep.subr.bf16.mxu0 %v361
    %448 = vmatpush1.bf16.msra.mxu0 %v358
    %449 = vmatprep.subr.bf16.mxu0 0
    %450 = vmatpush1.bf16.msra.mxu0 0
    %451 = vmatprep.subr.bf16.mxu0 0
    %452 = vmatpush1.bf16.msra.mxu0 0
    %453 = vmatprep.subr.bf16.mxu0 0
    %454 = vmatpush1.bf16.msra.mxu0 0
    %455 = vmatprep.subr.bf16.mxu0 0
    %456 = vmatpush1.bf16.msra.mxu0 0
    %457 = vmatprep.subr.bf16.mxu0 0
    %458 = vmatpush1.bf16.msra.mxu0 0
    %459 = vmatprep.subr.bf16.mxu0 0
    %460 = vmatpush1.bf16.msra.mxu0 0
    %461 = vmatprep.subr.bf16.mxu0 0
    %462 = vmatpush1.bf16.msra.mxu0 0
    %463 = vmatprep.subr.bf16.mxu0 0
    %464 = vmatpush1.bf16.msra.mxu0 0
    %465 = vmatprep.subr.bf16.mxu0 0
    %466 = vmatpush1.bf16.msra.mxu0 0
    %467 = vmatprep.subr.bf16.mxu0 0
    %468 = vmatpush1.bf16.msra.mxu0 0
    %469 = vmatprep.subr.bf16.mxu0 0
    %470 = vmatpush1.bf16.msra.mxu0 0
    %471 = vmatprep.subr.bf16.mxu0 0
    %472 = vmatpush1.bf16.msra.mxu0 0
    %473 = vmatprep.subr.bf16.mxu0 0
    %474 = vmatpush1.bf16.msra.mxu0 0
    %475 = vmatprep.subr.bf16.mxu0 0
    %476 = vmatpush1.bf16.msra.mxu0 0
    %477 = vmatprep.subr.bf16.mxu0 0
    %478 = vmatpush1.bf16.msra.mxu0 0
    %479 = vmatprep.mubr.f32.mxu0 0.0
    %480 = vmatmul.mubr.f32.gmra.mrb[0].mxu0 %v342
    %v481 = vpop.f32.mrb[0].mxu0
    %v482 = vadd.f32 %v277, %v481
    %v483 = vpop.f32.mrb[0].mxu0
    %v484 = vadd.f32 %v279, %v483
    %485 = vdwg.mxu0
    %486 = vmatprep.subr.bf16.mxu0 %v367
    %487 = vmatpush1.bf16.msra.mxu0 %v364
    %488 = vmatprep.subr.bf16.mxu0 0
    %489 = vmatpush1.bf16.msra.mxu0 0
    %490 = vmatprep.subr.bf16.mxu0 0
    %491 = vmatpush1.bf16.msra.mxu0 0
    %492 = vmatprep.subr.bf16.mxu0 0
    %493 = vmatpush1.bf16.msra.mxu0 0
    %494 = vmatprep.subr.bf16.mxu0 0
    %495 = vmatpush1.bf16.msra.mxu0 0
    %496 = vmatprep.subr.bf16.mxu0 0
    %497 = vmatpush1.bf16.msra.mxu0 0
    %498 = vmatprep.subr.bf16.mxu0 0
    %499 = vmatpush1.bf16.msra.mxu0 0
    %500 = vmatprep.subr.bf16.mxu0 0
    %501 = vmatpush1.bf16.msra.mxu0 0
    %502 = vmatprep.subr.bf16.mxu0 0
    %503 = vmatpush1.bf16.msra.mxu0 0
    %504 = vmatprep.subr.bf16.mxu0 0
    %505 = vmatpush1.bf16.msra.mxu0 0
    %506 = vmatprep.subr.bf16.mxu0 0
    %507 = vmatpush1.bf16.msra.mxu0 0
    %508 = vmatprep.subr.bf16.mxu0 0
    %509 = vmatpush1.bf16.msra.mxu0 0
    %510 = vmatprep.subr.bf16.mxu0 0
    %511 = vmatpush1.bf16.msra.mxu0 0
    %512 = vmatprep.subr.bf16.mxu0 0
    %513 = vmatpush1.bf16.msra.mxu0 0
    %514 = vmatprep.subr.bf16.mxu0 0
    %515 = vmatpush1.bf16.msra.mxu0 0
    %516 = vmatprep.subr.bf16.mxu0 0
    %517 = vmatpush1.bf16.msra.mxu0 0
    %518 = vmatprep.mubr.f32.mxu0 0.0
    %519 = vmatmul.mubr.f32.gmra.mrb[0].mxu0 %v342
    %v520 = vpop.f32.mrb[0].mxu0
    %v521 = vadd.f32 %v316, %v520
    %v522 = vpop.f32.mrb[0].mxu0
    %v523 = vadd.f32 %v318, %v522
    %524 = vdwg.mxu0
    %v525 = vld [vmem:[%s4] sm:$0xff]
    %v527 = vlaneseq
    %v528 = vshrl.u32 %v527, 7
    %v529 = vsub.s32 0, %v528
    %v530 = vrot.slane %v525, %v529
    %v531 = vlaneseq
    %v532 = vshrl.u32 %v531, 7
    %v533 = vsub.s32 1, %v532
    %v534 = vrot.slane %v525, %v533
    %v535 = vlaneseq
    %v536 = vshrl.u32 %v535, 7
    %v537 = vsub.s32 2, %v536
    %v538 = vrot.slane %v525, %v537
    %v539 = vlaneseq
    %v540 = vshrl.u32 %v539, 7
    %v541 = vsub.s32 3, %v540
    %v542 = vrot.slane %v525, %v541
    %v543 = vlaneseq
    %v544 = vshrl.u32 %v543, 7
    %v545 = vsub.s32 4, %v544
    %v546 = vrot.slane %v525, %v545
    %v547 = vlaneseq
    %v548 = vshrl.u32 %v547, 7
    %v549 = vsub.s32 5, %v548
    %v550 = vrot.slane %v525, %v549
    %v551 = vlaneseq
    %v552 = vshrl.u32 %v551, 7
    %v553 = vsub.s32 6, %v552
    %v554 = vrot.slane %v525, %v553
    %v555 = vlaneseq
    %v556 = vshrl.u32 %v555, 7
    %v557 = vsub.s32 7, %v556
    %v558 = vrot.slane %v525, %v557
    %v567 = vadd.f32 %v404, %v530
    %v568 = vadd.f32 %v406, %v534
    %v569 = vadd.f32 %v443, %v538
    %v570 = vadd.f32 %v445, %v542
    %v571 = vadd.f32 %v482, %v546
    %v572 = vadd.f32 %v484, %v550
    %v573 = vadd.f32 %v521, %v554
    %v574 = vadd.f32 %v523, %v558
    %v575 = vmax.f32 %v567, 0.0
    %v576 = vmax.f32 %v568, 0.0
    %v577 = vmax.f32 %v569, 0.0
    %v578 = vmax.f32 %v570, 0.0
    %v579 = vmax.f32 %v571, 0.0
    %v580 = vmax.f32 %v572, 0.0
    %v581 = vmax.f32 %v573, 0.0
    %v582 = vmax.f32 %v574, 0.0
    %v583 = vpack.c.bf16 %v575, %v575
    %v584 = vpack.c.bf16 %v576, %v576
    %v585 = vpack.c.bf16 %v577, %v577
    %v586 = vpack.c.bf16 %v578, %v578
    %v587 = vpack.c.bf16 %v579, %v579
    %v588 = vpack.c.bf16 %v580, %v580
    %v589 = vpack.c.bf16 %v581, %v581
    %v590 = vpack.c.bf16 %v582, %v582
    %v591 = vld [vmem:[#allocation7] sm:$0xff]
    %v592 = vld [vmem:[#allocation7 + $0x8] sm:$0xf]
    %v593 = vld [vmem:[#allocation7 + $0xc] sm:$0xff]
    %v594 = vld [vmem:[#allocation7 + $0x14] sm:$0xf]
    %v595 = vld [vmem:[#allocation7 + $0x18] sm:$0xff]
    %v596 = vld [vmem:[#allocation7 + $0x20] sm:$0xf]
    %v597 = vld [vmem:[#allocation7 + $0x24] sm:$0xff]
    %v598 = vld [vmem:[#allocation7 + $0x2c] sm:$0xf]
    %v599 = vld [vmem:[#allocation7 + $0x30] sm:$0xff]
    %v600 = vld [vmem:[#allocation7 + $0x38] sm:$0xf]
    %v601 = vld [vmem:[#allocation7 + $0x3c] sm:$0xff]
    %v602 = vld [vmem:[#allocation7 + $0x44] sm:$0xf]
    %v603 = vld [vmem:[#allocation7 + $0x48] sm:$0xff]
    %v604 = vld [vmem:[#allocation7 + $0x50] sm:$0xf]
    %v605 = vld [vmem:[#allocation7 + $0x54] sm:$0xff]
    %v606 = vld [vmem:[#allocation7 + $0x5c] sm:$0xf]
    %v607 = vld [vmem:[#allocation7 + $0x60] sm:$0xff]
    %v608 = vld [vmem:[#allocation7 + $0x68] sm:$0xf]
    %v609 = vld [vmem:[#allocation7 + $0x6c] sm:$0xff]
    %v610 = vld [vmem:[#allocation7 + $0x74] sm:$0xf]
    %v611 = vld [vmem:[#allocation7 + $0x78] sm:$0xff]
    %v612 = vld [vmem:[#allocation7 + $0x80] sm:$0xf]
    %v613 = vld [vmem:[#allocation7 + $0x84] sm:$0xff]
    %v614 = vld [vmem:[#allocation7 + $0x8c] sm:$0xf]
    %v615 = vld [vmem:[#allocation7 + $0x90] sm:$0xff]
    %v616 = vld [vmem:[#allocation7 + $0x98] sm:$0xf]
    %v617 = vld [vmem:[#allocation7 + $0x9c] sm:$0xff]
    %v618 = vld [vmem:[#allocation7 + $0xa4] sm:$0xf]
    %v619 = vld [vmem:[#allocation7 + $0xa8] sm:$0xff]
    %v620 = vld [vmem:[#allocation7 + $0xb0] sm:$0xf]
    %v621 = vld [vmem:[#allocation7 + $0xb4] sm:$0xff]
    %v622 = vld [vmem:[#allocation7 + $0xbc] sm:$0xf]
    %v623 = vld [vmem:[#allocation7 + $0xc0] sm:$0xff]
    %v624 = vld [vmem:[#allocation7 + $0xc8] sm:$0xf]
    %v625 = vld [vmem:[#allocation7 + $0xcc] sm:$0xff]
    %v626 = vld [vmem:[#allocation7 + $0xd4] sm:$0xf]
    %v627 = vld [vmem:[#allocation7 + $0xd8] sm:$0xff]
    %v628 = vld [vmem:[#allocation7 + $0xe0] sm:$0xf]
    %v629 = vld [vmem:[#allocation7 + $0xe4] sm:$0xff]
    %v630 = vld [vmem:[#allocation7 + $0xec] sm:$0xf]
    %v631 = vld [vmem:[#allocation7 + $0xf0] sm:$0xff]
    %v632 = vld [vmem:[#allocation7 + $0xf8] sm:$0xf]
    %v633 = vld [vmem:[#allocation7 + $0xfc] sm:$0xff]
    %v634 = vld [vmem:[#allocation7 + $0x104] sm:$0xf]
    %v635 = vld [vmem:[#allocation7 + $0x108] sm:$0xff]
    %v636 = vld [vmem:[#allocation7 + $0x110] sm:$0xf]
    %v637 = vld [vmem:[#allocation7 + $0x114] sm:$0xff]
    %v638 = vld [vmem:[#allocation7 + $0x11c] sm:$0xf]
    %v639 = vld [vmem:[#allocation7 + $0x120] sm:$0xff]
    %v640 = vld [vmem:[#allocation7 + $0x128] sm:$0xf]
    %v641 = vld [vmem:[#allocation7 + $0x12c] sm:$0xff]
    %v642 = vld [vmem:[#allocation7 + $0x134] sm:$0xf]
    %v643 = vld [vmem:[#allocation7 + $0x138] sm:$0xff]
    %v644 = vld [vmem:[#allocation7 + $0x140] sm:$0xf]
    %v645 = vld [vmem:[#allocation7 + $0x144] sm:$0xff]
    %v646 = vld [vmem:[#allocation7 + $0x14c] sm:$0xf]
    %v647 = vld [vmem:[#allocation7 + $0x150] sm:$0xff]
    %v648 = vld [vmem:[#allocation7 + $0x158] sm:$0xf]
    %v649 = vld [vmem:[#allocation7 + $0x15c] sm:$0xff]
    %v650 = vld [vmem:[#allocation7 + $0x164] sm:$0xf]
    %v651 = vld [vmem:[#allocation7 + $0x168] sm:$0xff]
    %v652 = vld [vmem:[#allocation7 + $0x170] sm:$0xf]
    %v653 = vld [vmem:[#allocation7 + $0x174] sm:$0xff]
    %v654 = vld [vmem:[#allocation7 + $0x17c] sm:$0xf]
    %v655 = vld [vmem:[#allocation7 + $0x180] sm:$0xff]
    %v656 = vld [vmem:[#allocation7 + $0x188] sm:$0xf]
    %v657 = vld [vmem:[#allocation7 + $0x18c] sm:$0xff]
    %v658 = vld [vmem:[#allocation7 + $0x194] sm:$0xf]
    %v659 = vld [vmem:[#allocation7 + $0x198] sm:$0xff]
    %v660 = vld [vmem:[#allocation7 + $0x1a0] sm:$0xf]
    %v661 = vld [vmem:[#allocation7 + $0x1a4] sm:$0xff]
    %v662 = vld [vmem:[#allocation7 + $0x1ac] sm:$0xf]
    %v663 = vld [vmem:[#allocation7 + $0x1b0] sm:$0xff]
    %v664 = vld [vmem:[#allocation7 + $0x1b8] sm:$0xf]
    %v665 = vld [vmem:[#allocation7 + $0x1bc] sm:$0xff]
    %v666 = vld [vmem:[#allocation7 + $0x1c4] sm:$0xf]
    %v667 = vld [vmem:[#allocation7 + $0x1c8] sm:$0xff]
    %v668 = vld [vmem:[#allocation7 + $0x1d0] sm:$0xf]
    %v669 = vld [vmem:[#allocation7 + $0x1d4] sm:$0xff]
    %v670 = vld [vmem:[#allocation7 + $0x1dc] sm:$0xf]
    %v671 = vld [vmem:[#allocation7 + $0x1e0] sm:$0xff]
    %v672 = vld [vmem:[#allocation7 + $0x1e8] sm:$0xf]
    %v673 = vld [vmem:[#allocation7 + $0x1ec] sm:$0xff]
    %v674 = vld [vmem:[#allocation7 + $0x1f4] sm:$0xf]
    %v675 = vld [vmem:[#allocation7 + $0x1f8] sm:$0xff]
    %v676 = vld [vmem:[#allocation7 + $0x200] sm:$0xf]
    %v677 = vld [vmem:[#allocation7 + $0x204] sm:$0xff]
    %v678 = vld [vmem:[#allocation7 + $0x20c] sm:$0xf]
    %v679 = vld [vmem:[#allocation7 + $0x210] sm:$0xff]
    %v680 = vld [vmem:[#allocation7 + $0x218] sm:$0xf]
    %v681 = vld [vmem:[#allocation7 + $0x21c] sm:$0xff]
    %v682 = vld [vmem:[#allocation7 + $0x224] sm:$0xf]
    %v683 = vld [vmem:[#allocation7 + $0x228] sm:$0xff]
    %v684 = vld [vmem:[#allocation7 + $0x230] sm:$0xf]
    %v685 = vld [vmem:[#allocation7 + $0x234] sm:$0xff]
    %v686 = vld [vmem:[#allocation7 + $0x23c] sm:$0xf]
    %v687 = vld [vmem:[#allocation7 + $0x240] sm:$0xff]
    %v688 = vld [vmem:[#allocation7 + $0x248] sm:$0xf]
    %v689 = vld [vmem:[#allocation7 + $0x24c] sm:$0xff]
    %v690 = vld [vmem:[#allocation7 + $0x254] sm:$0xf]
    %v691 = vld [vmem:[#allocation7 + $0x258] sm:$0xff]
    %v692 = vld [vmem:[#allocation7 + $0x260] sm:$0xf]
    %v693 = vld [vmem:[#allocation7 + $0x264] sm:$0xff]
    %v694 = vld [vmem:[#allocation7 + $0x26c] sm:$0xf]
    %v695 = vld [vmem:[#allocation7 + $0x270] sm:$0xff]
    %v696 = vld [vmem:[#allocation7 + $0x278] sm:$0xf]
    %v697 = vld [vmem:[#allocation7 + $0x27c] sm:$0xff]
    %v698 = vld [vmem:[#allocation7 + $0x284] sm:$0xf]
    %v699 = vld [vmem:[#allocation7 + $0x288] sm:$0xff]
    %v700 = vld [vmem:[#allocation7 + $0x290] sm:$0xf]
    %v701 = vld [vmem:[#allocation7 + $0x294] sm:$0xff]
    %v702 = vld [vmem:[#allocation7 + $0x29c] sm:$0xf]
    %v703 = vld [vmem:[#allocation7 + $0x2a0] sm:$0xff]
    %v704 = vld [vmem:[#allocation7 + $0x2a8] sm:$0xf]
    %v705 = vld [vmem:[#allocation7 + $0x2ac] sm:$0xff]
    %v706 = vld [vmem:[#allocation7 + $0x2b4] sm:$0xf]
    %v707 = vld [vmem:[#allocation7 + $0x2b8] sm:$0xff]
    %v708 = vld [vmem:[#allocation7 + $0x2c0] sm:$0xf]
    %v709 = vld [vmem:[#allocation7 + $0x2c4] sm:$0xff]
    %v710 = vld [vmem:[#allocation7 + $0x2cc] sm:$0xf]
    %v711 = vld [vmem:[#allocation7 + $0x2d0] sm:$0xff]
    %v712 = vld [vmem:[#allocation7 + $0x2d8] sm:$0xf]
    %v713 = vld [vmem:[#allocation7 + $0x2dc] sm:$0xff]
    %v714 = vld [vmem:[#allocation7 + $0x2e4] sm:$0xf]
    %v715 = vld [vmem:[#allocation7 + $0x2e8] sm:$0xff]
    %v716 = vld [vmem:[#allocation7 + $0x2f0] sm:$0xf]
    %v717 = vld [vmem:[#allocation7 + $0x2f4] sm:$0xff]
    %v718 = vld [vmem:[#allocation7 + $0x2fc] sm:$0xf]
    %v719 = vld [vmem:[%s6] sm:$0x7]
    %v721 = vlaneseq
    %v722 = vshrl.u32 %v721, 7
    %v723 = vsub.s32 0, %v722
    %v724 = vrot.slane %v719, %v723
    %v725 = vlaneseq
    %v726 = vshrl.u32 %v725, 7
    %v727 = vsub.s32 1, %v726
    %v728 = vrot.slane %v719, %v727
    %v729 = vlaneseq
    %v730 = vshrl.u32 %v729, 7
    %v731 = vsub.s32 2, %v730
    %v732 = vrot.slane %v719, %v731
    %v864 = vunpack.c.l.b16 %v591
    %v865 = vunpack.c.h.b16 %v591
    %v866 = vunpack.c.l.b16 %v592
    %v867 = vunpack.c.l.b16 %v593
    %v868 = vunpack.c.h.b16 %v593
    %v869 = vunpack.c.l.b16 %v594
    %v870 = vunpack.c.l.b16 %v595
    %v871 = vunpack.c.h.b16 %v595
    %v872 = vunpack.c.l.b16 %v596
    %v873 = vunpack.c.l.b16 %v597
    %v874 = vunpack.c.h.b16 %v597
    %v875 = vunpack.c.l.b16 %v598
    %v876 = vunpack.c.l.b16 %v599
    %v877 = vunpack.c.h.b16 %v599
    %v878 = vunpack.c.l.b16 %v600
    %v879 = vunpack.c.l.b16 %v601
    %v880 = vunpack.c.h.b16 %v601
    %v881 = vunpack.c.l.b16 %v602
    %v882 = vunpack.c.l.b16 %v603
    %v883 = vunpack.c.h.b16 %v603
    %v884 = vunpack.c.l.b16 %v604
    %v885 = vunpack.c.l.b16 %v605
    %v886 = vunpack.c.h.b16 %v605
    %v887 = vunpack.c.l.b16 %v606
    %v888 = vunpack.c.l.b16 %v607
    %v889 = vunpack.c.h.b16 %v607
    %v890 = vunpack.c.l.b16 %v608
    %v891 = vunpack.c.l.b16 %v609
    %v892 = vunpack.c.h.b16 %v609
    %v893 = vunpack.c.l.b16 %v610
    %v894 = vunpack.c.l.b16 %v611
    %v895 = vunpack.c.h.b16 %v611
    %v896 = vunpack.c.l.b16 %v612
    %v897 = vunpack.c.l.b16 %v613
    %v898 = vunpack.c.h.b16 %v613
    %v899 = vunpack.c.l.b16 %v614
    %v900 = vunpack.c.l.b16 %v615
    %v901 = vunpack.c.h.b16 %v615
    %v902 = vunpack.c.l.b16 %v616
    %v903 = vunpack.c.l.b16 %v617
    %v904 = vunpack.c.h.b16 %v617
    %v905 = vunpack.c.l.b16 %v618
    %v906 = vunpack.c.l.b16 %v619
    %v907 = vunpack.c.h.b16 %v619
    %v908 = vunpack.c.l.b16 %v620
    %v909 = vunpack.c.l.b16 %v621
    %v910 = vunpack.c.h.b16 %v621
    %v911 = vunpack.c.l.b16 %v622
    %v912 = vunpack.c.l.b16 %v623
    %v913 = vunpack.c.h.b16 %v623
    %v914 = vunpack.c.l.b16 %v624
    %v915 = vunpack.c.l.b16 %v625
    %v916 = vunpack.c.h.b16 %v625
    %v917 = vunpack.c.l.b16 %v626
    %v918 = vunpack.c.l.b16 %v627
    %v919 = vunpack.c.h.b16 %v627
    %v920 = vunpack.c.l.b16 %v628
    %v921 = vunpack.c.l.b16 %v629
    %v922 = vunpack.c.h.b16 %v629
    %v923 = vunpack.c.l.b16 %v630
    %v924 = vunpack.c.l.b16 %v631
    %v925 = vunpack.c.h.b16 %v631
    %v926 = vunpack.c.l.b16 %v632
    %v927 = vunpack.c.l.b16 %v633
    %v928 = vunpack.c.h.b16 %v633
    %v929 = vunpack.c.l.b16 %v634
    %v930 = vunpack.c.l.b16 %v635
    %v931 = vunpack.c.h.b16 %v635
    %v932 = vunpack.c.l.b16 %v636
    %v933 = vunpack.c.l.b16 %v637
    %v934 = vunpack.c.h.b16 %v637
    %v935 = vunpack.c.l.b16 %v638
    %v936 = vunpack.c.l.b16 %v639
    %v937 = vunpack.c.h.b16 %v639
    %v938 = vunpack.c.l.b16 %v640
    %v939 = vunpack.c.l.b16 %v641
    %v940 = vunpack.c.h.b16 %v641
    %v941 = vunpack.c.l.b16 %v642
    %v942 = vunpack.c.l.b16 %v643
    %v943 = vunpack.c.h.b16 %v643
    %v944 = vunpack.c.l.b16 %v644
    %v945 = vunpack.c.l.b16 %v645
    %v946 = vunpack.c.h.b16 %v645
    %v947 = vunpack.c.l.b16 %v646
    %v948 = vunpack.c.l.b16 %v647
    %v949 = vunpack.c.h.b16 %v647
    %v950 = vunpack.c.l.b16 %v648
    %v951 = vunpack.c.l.b16 %v649
    %v952 = vunpack.c.h.b16 %v649
    %v953 = vunpack.c.l.b16 %v650
    %v954 = vunpack.c.l.b16 %v651
    %v955 = vunpack.c.h.b16 %v651
    %v956 = vunpack.c.l.b16 %v652
    %v957 = vunpack.c.l.b16 %v653
    %v958 = vunpack.c.h.b16 %v653
    %v959 = vunpack.c.l.b16 %v654
    %v960 = vunpack.c.l.b16 %v655
    %v961 = vunpack.c.h.b16 %v655
    %v962 = vunpack.c.l.b16 %v656
    %v963 = vunpack.c.l.b16 %v657
    %v964 = vunpack.c.h.b16 %v657
    %v965 = vunpack.c.l.b16 %v658
    %v966 = vunpack.c.l.b16 %v659
    %v967 = vunpack.c.h.b16 %v659
    %v968 = vunpack.c.l.b16 %v660
    %v969 = vunpack.c.l.b16 %v661
    %v970 = vunpack.c.h.b16 %v661
    %v971 = vunpack.c.l.b16 %v662
    %v972 = vunpack.c.l.b16 %v663
    %v973 = vunpack.c.h.b16 %v663
    %v974 = vunpack.c.l.b16 %v664
    %v975 = vunpack.c.l.b16 %v665
    %v976 = vunpack.c.h.b16 %v665
    %v977 = vunpack.c.l.b16 %v666
    %v978 = vunpack.c.l.b16 %v667
    %v979 = vunpack.c.h.b16 %v667
    %v980 = vunpack.c.l.b16 %v668
    %v981 = vunpack.c.l.b16 %v669
    %v982 = vunpack.c.h.b16 %v669
    %v983 = vunpack.c.l.b16 %v670
    %v984 = vunpack.c.l.b16 %v671
    %v985 = vunpack.c.h.b16 %v671
    %v986 = vunpack.c.l.b16 %v672
    %v987 = vunpack.c.l.b16 %v673
    %v988 = vunpack.c.h.b16 %v673
    %v989 = vunpack.c.l.b16 %v674
    %v990 = vunpack.c.l.b16 %v675
    %v991 = vunpack.c.h.b16 %v675
    %v992 = vunpack.c.l.b16 %v676
    %v993 = vunpack.c.l.b16 %v677
    %v994 = vunpack.c.h.b16 %v677
    %v995 = vunpack.c.l.b16 %v678
    %v996 = vunpack.c.l.b16 %v679
    %v997 = vunpack.c.h.b16 %v679
    %v998 = vunpack.c.l.b16 %v680
    %v999 = vunpack.c.l.b16 %v681
    %v1000 = vunpack.c.h.b16 %v681
    %v1001 = vunpack.c.l.b16 %v682
    %v1002 = vunpack.c.l.b16 %v683
    %v1003 = vunpack.c.h.b16 %v683
    %v1004 = vunpack.c.l.b16 %v684
    %v1005 = vunpack.c.l.b16 %v685
    %v1006 = vunpack.c.h.b16 %v685
    %v1007 = vunpack.c.l.b16 %v686
    %v1008 = vunpack.c.l.b16 %v687
    %v1009 = vunpack.c.h.b16 %v687
    %v1010 = vunpack.c.l.b16 %v688
    %v1011 = vunpack.c.l.b16 %v689
    %v1012 = vunpack.c.h.b16 %v689
    %v1013 = vunpack.c.l.b16 %v690
    %v1014 = vunpack.c.l.b16 %v691
    %v1015 = vunpack.c.h.b16 %v691
    %v1016 = vunpack.c.l.b16 %v692
    %v1017 = vunpack.c.l.b16 %v693
    %v1018 = vunpack.c.h.b16 %v693
    %v1019 = vunpack.c.l.b16 %v694
    %v1020 = vunpack.c.l.b16 %v695
    %v1021 = vunpack.c.h.b16 %v695
    %v1022 = vunpack.c.l.b16 %v696
    %v1023 = vunpack.c.l.b16 %v697
    %v1024 = vunpack.c.h.b16 %v697
    %v1025 = vunpack.c.l.b16 %v698
    %v1026 = vunpack.c.l.b16 %v699
    %v1027 = vunpack.c.h.b16 %v699
    %v1028 = vunpack.c.l.b16 %v700
    %v1029 = vunpack.c.l.b16 %v701
    %v1030 = vunpack.c.h.b16 %v701
    %v1031 = vunpack.c.l.b16 %v702
    %v1032 = vunpack.c.l.b16 %v703
    %v1033 = vunpack.c.h.b16 %v703
    %v1034 = vunpack.c.l.b16 %v704
    %v1035 = vunpack.c.l.b16 %v705
    %v1036 = vunpack.c.h.b16 %v705
    %v1037 = vunpack.c.l.b16 %v706
    %v1038 = vunpack.c.l.b16 %v707
    %v1039 = vunpack.c.h.b16 %v707
    %v1040 = vunpack.c.l.b16 %v708
    %v1041 = vunpack.c.l.b16 %v709
    %v1042 = vunpack.c.h.b16 %v709
    %v1043 = vunpack.c.l.b16 %v710
    %v1044 = vunpack.c.l.b16 %v711
    %v1045 = vunpack.c.h.b16 %v711
    %v1046 = vunpack.c.l.b16 %v712
    %v1047 = vunpack.c.l.b16 %v713
    %v1048 = vunpack.c.h.b16 %v713
    %v1049 = vunpack.c.l.b16 %v714
    %v1050 = vunpack.c.l.b16 %v715
    %v1051 = vunpack.c.h.b16 %v715
    %v1052 = vunpack.c.l.b16 %v716
    %v1053 = vunpack.c.l.b16 %v717
    %v1054 = vunpack.c.h.b16 %v717
    %v1055 = vunpack.c.l.b16 %v718
    %v1056 = vpack.c.b16 %v867, %v864
    %v1057 = vpack.c.b16 %v868, %v865
    %v1058 = vpack.c.b16 %v869, %v866
    %v1059 = vpack.c.b16 %v873, %v870
    %v1060 = vpack.c.b16 %v874, %v871
    %v1061 = vpack.c.b16 %v875, %v872
    %v1062 = vpack.c.b16 %v879, %v876
    %v1063 = vpack.c.b16 %v880, %v877
    %v1064 = vpack.c.b16 %v881, %v878
    %v1065 = vpack.c.b16 %v885, %v882
    %v1066 = vpack.c.b16 %v886, %v883
    %v1067 = vpack.c.b16 %v887, %v884
    %v1068 = vpack.c.b16 %v891, %v888
    %v1069 = vpack.c.b16 %v892, %v889
    %v1070 = vpack.c.b16 %v893, %v890
    %v1071 = vpack.c.b16 %v897, %v894
    %v1072 = vpack.c.b16 %v898, %v895
    %v1073 = vpack.c.b16 %v899, %v896
    %v1074 = vpack.c.b16 %v903, %v900
    %v1075 = vpack.c.b16 %v904, %v901
    %v1076 = vpack.c.b16 %v905, %v902
    %v1077 = vpack.c.b16 %v909, %v906
    %v1078 = vpack.c.b16 %v910, %v907
    %v1079 = vpack.c.b16 %v911, %v908
    %v1080 = vpack.c.b16 %v915, %v912
    %v1081 = vpack.c.b16 %v916, %v913
    %v1082 = vpack.c.b16 %v917, %v914
    %v1083 = vpack.c.b16 %v921, %v918
    %v1084 = vpack.c.b16 %v922, %v919
    %v1085 = vpack.c.b16 %v923, %v920
    %v1086 = vpack.c.b16 %v927, %v924
    %v1087 = vpack.c.b16 %v928, %v925
    %v1088 = vpack.c.b16 %v929, %v926
    %v1089 = vpack.c.b16 %v933, %v930
    %v1090 = vpack.c.b16 %v934, %v931
    %v1091 = vpack.c.b16 %v935, %v932
    %v1092 = vpack.c.b16 %v939, %v936
    %v1093 = vpack.c.b16 %v940, %v937
    %v1094 = vpack.c.b16 %v941, %v938
    %v1095 = vpack.c.b16 %v945, %v942
    %v1096 = vpack.c.b16 %v946, %v943
    %v1097 = vpack.c.b16 %v947, %v944
    %v1098 = vpack.c.b16 %v951, %v948
    %v1099 = vpack.c.b16 %v952, %v949
    %v1100 = vpack.c.b16 %v953, %v950
    %v1101 = vpack.c.b16 %v957, %v954
    %v1102 = vpack.c.b16 %v958, %v955
    %v1103 = vpack.c.b16 %v959, %v956
    %v1104 = vpack.c.b16 %v963, %v960
    %v1105 = vpack.c.b16 %v964, %v961
    %v1106 = vpack.c.b16 %v965, %v962
    %v1107 = vpack.c.b16 %v969, %v966
    %v1108 = vpack.c.b16 %v970, %v967
    %v1109 = vpack.c.b16 %v971, %v968
    %v1110 = vpack.c.b16 %v975, %v972
    %v1111 = vpack.c.b16 %v976, %v973
    %v1112 = vpack.c.b16 %v977, %v974
    %v1113 = vpack.c.b16 %v981, %v978
    %v1114 = vpack.c.b16 %v982, %v979
    %v1115 = vpack.c.b16 %v983, %v980
    %v1116 = vpack.c.b16 %v987, %v984
    %v1117 = vpack.c.b16 %v988, %v985
    %v1118 = vpack.c.b16 %v989, %v986
    %v1119 = vpack.c.b16 %v993, %v990
    %v1120 = vpack.c.b16 %v994, %v991
    %v1121 = vpack.c.b16 %v995, %v992
    %v1122 = vpack.c.b16 %v999, %v996
    %v1123 = vpack.c.b16 %v1000, %v997
    %v1124 = vpack.c.b16 %v1001, %v998
    %v1125 = vpack.c.b16 %v1005, %v1002
    %v1126 = vpack.c.b16 %v1006, %v1003
    %v1127 = vpack.c.b16 %v1007, %v1004
    %v1128 = vpack.c.b16 %v1011, %v1008
    %v1129 = vpack.c.b16 %v1012, %v1009
    %v1130 = vpack.c.b16 %v1013, %v1010
    %v1131 = vpack.c.b16 %v1017, %v1014
    %v1132 = vpack.c.b16 %v1018, %v1015
    %v1133 = vpack.c.b16 %v1019, %v1016
    %v1134 = vpack.c.b16 %v1023, %v1020
    %v1135 = vpack.c.b16 %v1024, %v1021
    %v1136 = vpack.c.b16 %v1025, %v1022
    %v1137 = vpack.c.b16 %v1029, %v1026
    %v1138 = vpack.c.b16 %v1030, %v1027
    %v1139 = vpack.c.b16 %v1031, %v1028
    %v1140 = vpack.c.b16 %v1035, %v1032
    %v1141 = vpack.c.b16 %v1036, %v1033
    %v1142 = vpack.c.b16 %v1037, %v1034
    %v1143 = vpack.c.b16 %v1041, %v1038
    %v1144 = vpack.c.b16 %v1042, %v1039
    %v1145 = vpack.c.b16 %v1043, %v1040
    %v1146 = vpack.c.b16 %v1047, %v1044
    %v1147 = vpack.c.b16 %v1048, %v1045
    %v1148 = vpack.c.b16 %v1049, %v1046
    %v1149 = vpack.c.b16 %v1053, %v1050
    %v1150 = vpack.c.b16 %v1054, %v1051
    %v1151 = vpack.c.b16 %v1055, %v1052
    %1248 = vmatprep.subr.bf16.mxu0 %v1057
    %1249 = vmatpush1.bf16.msra.mxu0 %v1056
    %1250 = vmatprep.subr.bf16.mxu0 %v1060
    %1251 = vmatpush1.bf16.msra.mxu0 %v1059
    %1252 = vmatprep.subr.bf16.mxu0 %v1063
    %1253 = vmatpush1.bf16.msra.mxu0 %v1062
    %1254 = vmatprep.subr.bf16.mxu0 %v1066
    %1255 = vmatpush1.bf16.msra.mxu0 %v1065
    %1256 = vmatprep.subr.bf16.mxu0 %v1069
    %1257 = vmatpush1.bf16.msra.mxu0 %v1068
    %1258 = vmatprep.subr.bf16.mxu0 %v1072
    %1259 = vmatpush1.bf16.msra.mxu0 %v1071
    %1260 = vmatprep.subr.bf16.mxu0 %v1075
    %1261 = vmatpush1.bf16.msra.mxu0 %v1074
    %1262 = vmatprep.subr.bf16.mxu0 %v1078
    %1263 = vmatpush1.bf16.msra.mxu0 %v1077
    %1264 = vmatprep.subr.bf16.mxu0 %v1081
    %1265 = vmatpush1.bf16.msra.mxu0 %v1080
    %1266 = vmatprep.subr.bf16.mxu0 %v1084
    %1267 = vmatpush1.bf16.msra.mxu0 %v1083
    %1268 = vmatprep.subr.bf16.mxu0 %v1087
    %1269 = vmatpush1.bf16.msra.mxu0 %v1086
    %1270 = vmatprep.subr.bf16.mxu0 %v1090
    %1271 = vmatpush1.bf16.msra.mxu0 %v1089
    %1272 = vmatprep.subr.bf16.mxu0 %v1093
    %1273 = vmatpush1.bf16.msra.mxu0 %v1092
    %1274 = vmatprep.subr.bf16.mxu0 %v1096
    %1275 = vmatpush1.bf16.msra.mxu0 %v1095
    %1276 = vmatprep.subr.bf16.mxu0 %v1099
    %1277 = vmatpush1.bf16.msra.mxu0 %v1098
    %1278 = vmatprep.subr.bf16.mxu0 %v1102
    %1279 = vmatpush1.bf16.msra.mxu0 %v1101
    %1280 = vmatprep.mubr.bf16.mxu0 %v584
    %1281 = vmatmul.mubr.bf16.gmra.mrb[0].mxu0 %v583
    %v1282 = vpop.f32.mrb[0].mxu0
    %v1283 = vadd.f32 %v724, %v1282
    %v1284 = vpop.f32.mrb[0].mxu0
    %v1285 = vadd.f32 %v728, %v1284
    %v1286 = vpop.f32.mrb[0].mxu0
    %v1287 = vpop.f32.mrb[0].mxu0
    %1288 = vdwg.mxu0
    %1289 = vmatprep.subr.bf16.mxu0 %v1105
    %1290 = vmatpush1.bf16.msra.mxu0 %v1104
    %1291 = vmatprep.subr.bf16.mxu0 %v1108
    %1292 = vmatpush1.bf16.msra.mxu0 %v1107
    %1293 = vmatprep.subr.bf16.mxu0 %v1111
    %1294 = vmatpush1.bf16.msra.mxu0 %v1110
    %1295 = vmatprep.subr.bf16.mxu0 %v1114
    %1296 = vmatpush1.bf16.msra.mxu0 %v1113
    %1297 = vmatprep.subr.bf16.mxu0 %v1117
    %1298 = vmatpush1.bf16.msra.mxu0 %v1116
    %1299 = vmatprep.subr.bf16.mxu0 %v1120
    %1300 = vmatpush1.bf16.msra.mxu0 %v1119
    %1301 = vmatprep.subr.bf16.mxu0 %v1123
    %1302 = vmatpush1.bf16.msra.mxu0 %v1122
    %1303 = vmatprep.subr.bf16.mxu0 %v1126
    %1304 = vmatpush1.bf16.msra.mxu0 %v1125
    %1305 = vmatprep.subr.bf16.mxu0 %v1129
    %1306 = vmatpush1.bf16.msra.mxu0 %v1128
    %1307 = vmatprep.subr.bf16.mxu0 %v1132
    %1308 = vmatpush1.bf16.msra.mxu0 %v1131
    %1309 = vmatprep.subr.bf16.mxu0 %v1135
    %1310 = vmatpush1.bf16.msra.mxu0 %v1134
    %1311 = vmatprep.subr.bf16.mxu0 %v1138
    %1312 = vmatpush1.bf16.msra.mxu0 %v1137
    %1313 = vmatprep.subr.bf16.mxu0 %v1141
    %1314 = vmatpush1.bf16.msra.mxu0 %v1140
    %1315 = vmatprep.subr.bf16.mxu0 %v1144
    %1316 = vmatpush1.bf16.msra.mxu0 %v1143
    %1317 = vmatprep.subr.bf16.mxu0 %v1147
    %1318 = vmatpush1.bf16.msra.mxu0 %v1146
    %1319 = vmatprep.subr.bf16.mxu0 %v1150
    %1320 = vmatpush1.bf16.msra.mxu0 %v1149
    %1321 = vmatprep.mubr.bf16.mxu0 %v586
    %1322 = vmatmul.mubr.bf16.gmra.mrb[0].mxu0 %v585
    %v1323 = vpop.f32.mrb[0].mxu0
    %v1324 = vadd.f32 %v1283, %v1323
    %v1325 = vpop.f32.mrb[0].mxu0
    %v1326 = vadd.f32 %v1285, %v1325
    %v1327 = vpop.f32.mrb[0].mxu0
    %v1328 = vpop.f32.mrb[0].mxu0
    %1329 = vdwg.mxu0
    %1330 = vmatprep.subr.bf16.mxu0 0
    %1331 = vmatpush1.bf16.msra.mxu0 %v1058
    %1332 = vmatprep.subr.bf16.mxu0 0
    %1333 = vmatpush1.bf16.msra.mxu0 %v1061
    %1334 = vmatprep.subr.bf16.mxu0 0
    %1335 = vmatpush1.bf16.msra.mxu0 %v1064
    %1336 = vmatprep.subr.bf16.mxu0 0
    %1337 = vmatpush1.bf16.msra.mxu0 %v1067
    %1338 = vmatprep.subr.bf16.mxu0 0
    %1339 = vmatpush1.bf16.msra.mxu0 %v1070
    %1340 = vmatprep.subr.bf16.mxu0 0
    %1341 = vmatpush1.bf16.msra.mxu0 %v1073
    %1342 = vmatprep.subr.bf16.mxu0 0
    %1343 = vmatpush1.bf16.msra.mxu0 %v1076
    %1344 = vmatprep.subr.bf16.mxu0 0
    %1345 = vmatpush1.bf16.msra.mxu0 %v1079
    %1346 = vmatprep.subr.bf16.mxu0 0
    %1347 = vmatpush1.bf16.msra.mxu0 %v1082
    %1348 = vmatprep.subr.bf16.mxu0 0
    %1349 = vmatpush1.bf16.msra.mxu0 %v1085
    %1350 = vmatprep.subr.bf16.mxu0 0
    %1351 = vmatpush1.bf16.msra.mxu0 %v1088
    %1352 = vmatprep.subr.bf16.mxu0 0
    %1353 = vmatpush1.bf16.msra.mxu0 %v1091
    %1354 = vmatprep.subr.bf16.mxu0 0
    %1355 = vmatpush1.bf16.msra.mxu0 %v1094
    %1356 = vmatprep.subr.bf16.mxu0 0
    %1357 = vmatpush1.bf16.msra.mxu0 %v1097
    %1358 = vmatprep.subr.bf16.mxu0 0
    %1359 = vmatpush1.bf16.msra.mxu0 %v1100
    %1360 = vmatprep.subr.bf16.mxu0 0
    %1361 = vmatpush1.bf16.msra.mxu0 %v1103
    %1362 = vmatprep.mubr.bf16.mxu0 %v584
    %1363 = vmatmul.mubr.bf16.gmra.mrb[0].mxu0 %v583
    %v1364 = vpop.f32.mrb[0].mxu0
    %v1365 = vadd.f32 %v732, %v1364
    %v1366 = vpop.f32.mrb[0].mxu0
    %v1367 = vpop.f32.mrb[0].mxu0
    %v1368 = vpop.f32.mrb[0].mxu0
    %1369 = vdwg.mxu0
    %1370 = vmatprep.subr.bf16.mxu0 0
    %1371 = vmatpush1.bf16.msra.mxu0 %v1106
    %1372 = vmatprep.subr.bf16.mxu0 0
    %1373 = vmatpush1.bf16.msra.mxu0 %v1109
    %1374 = vmatprep.subr.bf16.mxu0 0
    %1375 = vmatpush1.bf16.msra.mxu0 %v1112
    %1376 = vmatprep.subr.bf16.mxu0 0
    %1377 = vmatpush1.bf16.msra.mxu0 %v1115
    %1378 = vmatprep.subr.bf16.mxu0 0
    %1379 = vmatpush1.bf16.msra.mxu0 %v1118
    %1380 = vmatprep.subr.bf16.mxu0 0
    %1381 = vmatpush1.bf16.msra.mxu0 %v1121
    %1382 = vmatprep.subr.bf16.mxu0 0
    %1383 = vmatpush1.bf16.msra.mxu0 %v1124
    %1384 = vmatprep.subr.bf16.mxu0 0
    %1385 = vmatpush1.bf16.msra.mxu0 %v1127
    %1386 = vmatprep.subr.bf16.mxu0 0
    %1387 = vmatpush1.bf16.msra.mxu0 %v1130
    %1388 = vmatprep.subr.bf16.mxu0 0
    %1389 = vmatpush1.bf16.msra.mxu0 %v1133
    %1390 = vmatprep.subr.bf16.mxu0 0
    %1391 = vmatpush1.bf16.msra.mxu0 %v1136
    %1392 = vmatprep.subr.bf16.mxu0 0
    %1393 = vmatpush1.bf16.msra.mxu0 %v1139
    %1394 = vmatprep.subr.bf16.mxu0 0
    %1395 = vmatpush1.bf16.msra.mxu0 %v1142
    %1396 = vmatprep.subr.bf16.mxu0 0
    %1397 = vmatpush1.bf16.msra.mxu0 %v1145
    %1398 = vmatprep.subr.bf16.mxu0 0
    %1399 = vmatpush1.bf16.msra.mxu0 %v1148
    %1400 = vmatprep.subr.bf16.mxu0 0
    %1401 = vmatpush1.bf16.msra.mxu0 %v1151
    %1402 = vmatprep.mubr.bf16.mxu0 %v586
    %1403 = vmatmul.mubr.bf16.gmra.mrb[0].mxu0 %v585
    %v1404 = vpop.f32.mrb[0].mxu0
    %v1405 = vadd.f32 %v1365, %v1404
    %v1406 = vpop.f32.mrb[0].mxu0
    %v1407 = vpop.f32.mrb[0].mxu0
    %v1408 = vpop.f32.mrb[0].mxu0
    %1409 = vdwg.mxu0
    %v1410 = vmax.f32 %v1324, 0.0
    %v1411 = vmax.f32 %v1326, 0.0
    %v1412 = vmax.f32 %v1405, 0.0
    %v1413 = vld [vmem:[#allocation8] sm:$0xff]
    %v1414 = vld [vmem:[#allocation8 + $0x8] sm:$0xf]
    %v1415 = vld [vmem:[#allocation8 + $0xc] sm:$0xff]
    %v1416 = vld [vmem:[#allocation8 + $0x14] sm:$0xf]
    %v1417 = vld [vmem:[#allocation8 + $0x18] sm:$0xff]
    %v1418 = vld [vmem:[#allocation8 + $0x20] sm:$0xf]
    %v1419 = vld [vmem:[#allocation8 + $0x24] sm:$0xff]
    %v1420 = vld [vmem:[#allocation8 + $0x2c] sm:$0xf]
    %v1421 = vld [vmem:[#allocation8 + $0x30] sm:$0xff]
    %v1422 = vld [vmem:[#allocation8 + $0x38] sm:$0xf]
    %v1423 = vld [vmem:[#allocation8 + $0x3c] sm:$0xff]
    %v1424 = vld [vmem:[#allocation8 + $0x44] sm:$0xf]
    %v1425 = vld [vmem:[#allocation8 + $0x48] sm:$0xff]
    %v1426 = vld [vmem:[#allocation8 + $0x50] sm:$0xf]
    %v1427 = vld [vmem:[#allocation8 + $0x54] sm:$0xff]
    %v1428 = vld [vmem:[#allocation8 + $0x5c] sm:$0xf]
    %v1429 = vld [vmem:[#allocation8 + $0x60] sm:$0xff]
    %v1430 = vld [vmem:[#allocation8 + $0x68] sm:$0xf]
    %v1431 = vld [vmem:[#allocation8 + $0x6c] sm:$0xff]
    %v1432 = vld [vmem:[#allocation8 + $0x74] sm:$0xf]
    %v1433 = vld [vmem:[#allocation8 + $0x78] sm:$0xff]
    %v1434 = vld [vmem:[#allocation8 + $0x80] sm:$0xf]
    %v1435 = vld [vmem:[#allocation8 + $0x84] sm:$0xff]
    %v1436 = vld [vmem:[#allocation8 + $0x8c] sm:$0xf]
    %v1437 = vld [vmem:[#allocation8 + $0x90] sm:$0xff]
    %v1438 = vld [vmem:[#allocation8 + $0x98] sm:$0xf]
    %v1439 = vld [vmem:[#allocation8 + $0x9c] sm:$0xff]
    %v1440 = vld [vmem:[#allocation8 + $0xa4] sm:$0xf]
    %v1441 = vld [vmem:[#allocation8 + $0xa8] sm:$0xff]
    %v1442 = vld [vmem:[#allocation8 + $0xb0] sm:$0xf]
    %v1443 = vld [vmem:[#allocation8 + $0xb4] sm:$0xff]
    %v1444 = vld [vmem:[#allocation8 + $0xbc] sm:$0xf]
    %v1445 = vld [vmem:[#allocation8 + $0xc0] sm:$0xff]
    %v1446 = vld [vmem:[#allocation8 + $0xc8] sm:$0xf]
    %v1447 = vld [vmem:[#allocation8 + $0xcc] sm:$0xff]
    %v1448 = vld [vmem:[#allocation8 + $0xd4] sm:$0xf]
    %v1449 = vld [vmem:[#allocation8 + $0xd8] sm:$0xff]
    %v1450 = vld [vmem:[#allocation8 + $0xe0] sm:$0xf]
    %v1451 = vld [vmem:[#allocation8 + $0xe4] sm:$0xff]
    %v1452 = vld [vmem:[#allocation8 + $0xec] sm:$0xf]
    %v1453 = vld [vmem:[#allocation8 + $0xf0] sm:$0xff]
    %v1454 = vld [vmem:[#allocation8 + $0xf8] sm:$0xf]
    %v1455 = vld [vmem:[#allocation8 + $0xfc] sm:$0xff]
    %v1456 = vld [vmem:[#allocation8 + $0x104] sm:$0xf]
    %v1457 = vld [vmem:[#allocation8 + $0x108] sm:$0xff]
    %v1458 = vld [vmem:[#allocation8 + $0x110] sm:$0xf]
    %v1459 = vld [vmem:[#allocation8 + $0x114] sm:$0xff]
    %v1460 = vld [vmem:[#allocation8 + $0x11c] sm:$0xf]
    %v1461 = vld [vmem:[#allocation8 + $0x120] sm:$0xff]
    %v1462 = vld [vmem:[#allocation8 + $0x128] sm:$0xf]
    %v1463 = vld [vmem:[#allocation8 + $0x12c] sm:$0xff]
    %v1464 = vld [vmem:[#allocation8 + $0x134] sm:$0xf]
    %v1465 = vld [vmem:[#allocation8 + $0x138] sm:$0xff]
    %v1466 = vld [vmem:[#allocation8 + $0x140] sm:$0xf]
    %v1467 = vld [vmem:[#allocation8 + $0x144] sm:$0xff]
    %v1468 = vld [vmem:[#allocation8 + $0x14c] sm:$0xf]
    %v1469 = vld [vmem:[#allocation8 + $0x150] sm:$0xff]
    %v1470 = vld [vmem:[#allocation8 + $0x158] sm:$0xf]
    %v1471 = vld [vmem:[#allocation8 + $0x15c] sm:$0xff]
    %v1472 = vld [vmem:[#allocation8 + $0x164] sm:$0xf]
    %v1473 = vld [vmem:[#allocation8 + $0x168] sm:$0xff]
    %v1474 = vld [vmem:[#allocation8 + $0x170] sm:$0xf]
    %v1475 = vld [vmem:[#allocation8 + $0x174] sm:$0xff]
    %v1476 = vld [vmem:[#allocation8 + $0x17c] sm:$0xf]
    %v1477 = vld [vmem:[#allocation8 + $0x180] sm:$0xff]
    %v1478 = vld [vmem:[#allocation8 + $0x188] sm:$0xf]
    %v1479 = vld [vmem:[#allocation8 + $0x18c] sm:$0xff]
    %v1480 = vld [vmem:[#allocation8 + $0x194] sm:$0xf]
    %v1481 = vld [vmem:[#allocation8 + $0x198] sm:$0xff]
    %v1482 = vld [vmem:[#allocation8 + $0x1a0] sm:$0xf]
    %v1483 = vld [vmem:[#allocation8 + $0x1a4] sm:$0xff]
    %v1484 = vld [vmem:[#allocation8 + $0x1ac] sm:$0xf]
    %v1485 = vld [vmem:[#allocation8 + $0x1b0] sm:$0xff]
    %v1486 = vld [vmem:[#allocation8 + $0x1b8] sm:$0xf]
    %v1487 = vld [vmem:[#allocation8 + $0x1bc] sm:$0xff]
    %v1488 = vld [vmem:[#allocation8 + $0x1c4] sm:$0xf]
    %v1489 = vld [vmem:[#allocation8 + $0x1c8] sm:$0xff]
    %v1490 = vld [vmem:[#allocation8 + $0x1d0] sm:$0xf]
    %v1491 = vld [vmem:[#allocation8 + $0x1d4] sm:$0xff]
    %v1492 = vld [vmem:[#allocation8 + $0x1dc] sm:$0xf]
    %v1493 = vld [vmem:[#allocation8 + $0x1e0] sm:$0xff]
    %v1494 = vld [vmem:[#allocation8 + $0x1e8] sm:$0xf]
    %v1495 = vld [vmem:[#allocation8 + $0x1ec] sm:$0xff]
    %v1496 = vld [vmem:[#allocation8 + $0x1f4] sm:$0xf]
    %v1497 = vld [vmem:[#allocation8 + $0x1f8] sm:$0xff]
    %v1498 = vld [vmem:[#allocation8 + $0x200] sm:$0xf]
    %v1499 = vld [vmem:[#allocation8 + $0x204] sm:$0xff]
    %v1500 = vld [vmem:[#allocation8 + $0x20c] sm:$0xf]
    %v1501 = vld [vmem:[#allocation8 + $0x210] sm:$0xff]
    %v1502 = vld [vmem:[#allocation8 + $0x218] sm:$0xf]
    %v1503 = vld [vmem:[#allocation8 + $0x21c] sm:$0xff]
    %v1504 = vld [vmem:[#allocation8 + $0x224] sm:$0xf]
    %v1505 = vld [vmem:[#allocation8 + $0x228] sm:$0xff]
    %v1506 = vld [vmem:[#allocation8 + $0x230] sm:$0xf]
    %v1507 = vld [vmem:[#allocation8 + $0x234] sm:$0xff]
    %v1508 = vld [vmem:[#allocation8 + $0x23c] sm:$0xf]
    %v1509 = vld [vmem:[#allocation8 + $0x240] sm:$0xff]
    %v1510 = vld [vmem:[#allocation8 + $0x248] sm:$0xf]
    %v1511 = vld [vmem:[#allocation8 + $0x24c] sm:$0xff]
    %v1512 = vld [vmem:[#allocation8 + $0x254] sm:$0xf]
    %v1513 = vld [vmem:[#allocation8 + $0x258] sm:$0xff]
    %v1514 = vld [vmem:[#allocation8 + $0x260] sm:$0xf]
    %v1515 = vld [vmem:[#allocation8 + $0x264] sm:$0xff]
    %v1516 = vld [vmem:[#allocation8 + $0x26c] sm:$0xf]
    %v1517 = vld [vmem:[#allocation8 + $0x270] sm:$0xff]
    %v1518 = vld [vmem:[#allocation8 + $0x278] sm:$0xf]
    %v1519 = vld [vmem:[#allocation8 + $0x27c] sm:$0xff]
    %v1520 = vld [vmem:[#allocation8 + $0x284] sm:$0xf]
    %v1521 = vld [vmem:[#allocation8 + $0x288] sm:$0xff]
    %v1522 = vld [vmem:[#allocation8 + $0x290] sm:$0xf]
    %v1523 = vld [vmem:[#allocation8 + $0x294] sm:$0xff]
    %v1524 = vld [vmem:[#allocation8 + $0x29c] sm:$0xf]
    %v1525 = vld [vmem:[#allocation8 + $0x2a0] sm:$0xff]
    %v1526 = vld [vmem:[#allocation8 + $0x2a8] sm:$0xf]
    %v1527 = vld [vmem:[#allocation8 + $0x2ac] sm:$0xff]
    %v1528 = vld [vmem:[#allocation8 + $0x2b4] sm:$0xf]
    %v1529 = vld [vmem:[#allocation8 + $0x2b8] sm:$0xff]
    %v1530 = vld [vmem:[#allocation8 + $0x2c0] sm:$0xf]
    %v1531 = vld [vmem:[#allocation8 + $0x2c4] sm:$0xff]
    %v1532 = vld [vmem:[#allocation8 + $0x2cc] sm:$0xf]
    %v1533 = vld [vmem:[#allocation8 + $0x2d0] sm:$0xff]
    %v1534 = vld [vmem:[#allocation8 + $0x2d8] sm:$0xf]
    %v1535 = vld [vmem:[#allocation8 + $0x2dc] sm:$0xff]
    %v1536 = vld [vmem:[#allocation8 + $0x2e4] sm:$0xf]
    %v1537 = vld [vmem:[#allocation8 + $0x2e8] sm:$0xff]
    %v1538 = vld [vmem:[#allocation8 + $0x2f0] sm:$0xf]
    %v1539 = vld [vmem:[#allocation8 + $0x2f4] sm:$0xff]
    %v1540 = vld [vmem:[#allocation8 + $0x2fc] sm:$0xf]
    %v1541 = vld [vmem:[%s8] sm:$0x7]
    %v1543 = vlaneseq
    %v1544 = vshrl.u32 %v1543, 7
    %v1545 = vsub.s32 0, %v1544
    %v1546 = vrot.slane %v1541, %v1545
    %v1547 = vlaneseq
    %v1548 = vshrl.u32 %v1547, 7
    %v1549 = vsub.s32 1, %v1548
    %v1550 = vrot.slane %v1541, %v1549
    %v1551 = vlaneseq
    %v1552 = vshrl.u32 %v1551, 7
    %v1553 = vsub.s32 2, %v1552
    %v1554 = vrot.slane %v1541, %v1553
    %v1686 = vunpack.c.l.b16 %v1413
    %v1687 = vunpack.c.h.b16 %v1413
    %v1688 = vunpack.c.l.b16 %v1414
    %v1689 = vunpack.c.l.b16 %v1415
    %v1690 = vunpack.c.h.b16 %v1415
    %v1691 = vunpack.c.l.b16 %v1416
    %v1692 = vunpack.c.l.b16 %v1417
    %v1693 = vunpack.c.h.b16 %v1417
    %v1694 = vunpack.c.l.b16 %v1418
    %v1695 = vunpack.c.l.b16 %v1419
    %v1696 = vunpack.c.h.b16 %v1419
    %v1697 = vunpack.c.l.b16 %v1420
    %v1698 = vunpack.c.l.b16 %v1421
    %v1699 = vunpack.c.h.b16 %v1421
    %v1700 = vunpack.c.l.b16 %v1422
    %v1701 = vunpack.c.l.b16 %v1423
    %v1702 = vunpack.c.h.b16 %v1423
    %v1703 = vunpack.c.l.b16 %v1424
    %v1704 = vunpack.c.l.b16 %v1425
    %v1705 = vunpack.c.h.b16 %v1425
    %v1706 = vunpack.c.l.b16 %v1426
    %v1707 = vunpack.c.l.b16 %v1427
    %v1708 = vunpack.c.h.b16 %v1427
    %v1709 = vunpack.c.l.b16 %v1428
    %v1710 = vunpack.c.l.b16 %v1429
    %v1711 = vunpack.c.h.b16 %v1429
    %v1712 = vunpack.c.l.b16 %v1430
    %v1713 = vunpack.c.l.b16 %v1431
    %v1714 = vunpack.c.h.b16 %v1431
    %v1715 = vunpack.c.l.b16 %v1432
    %v1716 = vunpack.c.l.b16 %v1433
    %v1717 = vunpack.c.h.b16 %v1433
    %v1718 = vunpack.c.l.b16 %v1434
    %v1719 = vunpack.c.l.b16 %v1435
    %v1720 = vunpack.c.h.b16 %v1435
    %v1721 = vunpack.c.l.b16 %v1436
    %v1722 = vunpack.c.l.b16 %v1437
    %v1723 = vunpack.c.h.b16 %v1437
    %v1724 = vunpack.c.l.b16 %v1438
    %v1725 = vunpack.c.l.b16 %v1439
    %v1726 = vunpack.c.h.b16 %v1439
    %v1727 = vunpack.c.l.b16 %v1440
    %v1728 = vunpack.c.l.b16 %v1441
    %v1729 = vunpack.c.h.b16 %v1441
    %v1730 = vunpack.c.l.b16 %v1442
    %v1731 = vunpack.c.l.b16 %v1443
    %v1732 = vunpack.c.h.b16 %v1443
    %v1733 = vunpack.c.l.b16 %v1444
    %v1734 = vunpack.c.l.b16 %v1445
    %v1735 = vunpack.c.h.b16 %v1445
    %v1736 = vunpack.c.l.b16 %v1446
    %v1737 = vunpack.c.l.b16 %v1447
    %v1738 = vunpack.c.h.b16 %v1447
    %v1739 = vunpack.c.l.b16 %v1448
    %v1740 = vunpack.c.l.b16 %v1449
    %v1741 = vunpack.c.h.b16 %v1449
    %v1742 = vunpack.c.l.b16 %v1450
    %v1743 = vunpack.c.l.b16 %v1451
    %v1744 = vunpack.c.h.b16 %v1451
    %v1745 = vunpack.c.l.b16 %v1452
    %v1746 = vunpack.c.l.b16 %v1453
    %v1747 = vunpack.c.h.b16 %v1453
    %v1748 = vunpack.c.l.b16 %v1454
    %v1749 = vunpack.c.l.b16 %v1455
    %v1750 = vunpack.c.h.b16 %v1455
    %v1751 = vunpack.c.l.b16 %v1456
    %v1752 = vunpack.c.l.b16 %v1457
    %v1753 = vunpack.c.h.b16 %v1457
    %v1754 = vunpack.c.l.b16 %v1458
    %v1755 = vunpack.c.l.b16 %v1459
    %v1756 = vunpack.c.h.b16 %v1459
    %v1757 = vunpack.c.l.b16 %v1460
    %v1758 = vunpack.c.l.b16 %v1461
    %v1759 = vunpack.c.h.b16 %v1461
    %v1760 = vunpack.c.l.b16 %v1462
    %v1761 = vunpack.c.l.b16 %v1463
    %v1762 = vunpack.c.h.b16 %v1463
    %v1763 = vunpack.c.l.b16 %v1464
    %v1764 = vunpack.c.l.b16 %v1465
    %v1765 = vunpack.c.h.b16 %v1465
    %v1766 = vunpack.c.l.b16 %v1466
    %v1767 = vunpack.c.l.b16 %v1467
    %v1768 = vunpack.c.h.b16 %v1467
    %v1769 = vunpack.c.l.b16 %v1468
    %v1770 = vunpack.c.l.b16 %v1469
    %v1771 = vunpack.c.h.b16 %v1469
    %v1772 = vunpack.c.l.b16 %v1470
    %v1773 = vunpack.c.l.b16 %v1471
    %v1774 = vunpack.c.h.b16 %v1471
    %v1775 = vunpack.c.l.b16 %v1472
    %v1776 = vunpack.c.l.b16 %v1473
    %v1777 = vunpack.c.h.b16 %v1473
    %v1778 = vunpack.c.l.b16 %v1474
    %v1779 = vunpack.c.l.b16 %v1475
    %v1780 = vunpack.c.h.b16 %v1475
    %v1781 = vunpack.c.l.b16 %v1476
    %v1782 = vunpack.c.l.b16 %v1477
    %v1783 = vunpack.c.h.b16 %v1477
    %v1784 = vunpack.c.l.b16 %v1478
    %v1785 = vunpack.c.l.b16 %v1479
    %v1786 = vunpack.c.h.b16 %v1479
    %v1787 = vunpack.c.l.b16 %v1480
    %v1788 = vunpack.c.l.b16 %v1481
    %v1789 = vunpack.c.h.b16 %v1481
    %v1790 = vunpack.c.l.b16 %v1482
    %v1791 = vunpack.c.l.b16 %v1483
    %v1792 = vunpack.c.h.b16 %v1483
    %v1793 = vunpack.c.l.b16 %v1484
    %v1794 = vunpack.c.l.b16 %v1485
    %v1795 = vunpack.c.h.b16 %v1485
    %v1796 = vunpack.c.l.b16 %v1486
    %v1797 = vunpack.c.l.b16 %v1487
    %v1798 = vunpack.c.h.b16 %v1487
    %v1799 = vunpack.c.l.b16 %v1488
    %v1800 = vunpack.c.l.b16 %v1489
    %v1801 = vunpack.c.h.b16 %v1489
    %v1802 = vunpack.c.l.b16 %v1490
    %v1803 = vunpack.c.l.b16 %v1491
    %v1804 = vunpack.c.h.b16 %v1491
    %v1805 = vunpack.c.l.b16 %v1492
    %v1806 = vunpack.c.l.b16 %v1493
    %v1807 = vunpack.c.h.b16 %v1493
    %v1808 = vunpack.c.l.b16 %v1494
    %v1809 = vunpack.c.l.b16 %v1495
    %v1810 = vunpack.c.h.b16 %v1495
    %v1811 = vunpack.c.l.b16 %v1496
    %v1812 = vunpack.c.l.b16 %v1497
    %v1813 = vunpack.c.h.b16 %v1497
    %v1814 = vunpack.c.l.b16 %v1498
    %v1815 = vunpack.c.l.b16 %v1499
    %v1816 = vunpack.c.h.b16 %v1499
    %v1817 = vunpack.c.l.b16 %v1500
    %v1818 = vunpack.c.l.b16 %v1501
    %v1819 = vunpack.c.h.b16 %v1501
    %v1820 = vunpack.c.l.b16 %v1502
    %v1821 = vunpack.c.l.b16 %v1503
    %v1822 = vunpack.c.h.b16 %v1503
    %v1823 = vunpack.c.l.b16 %v1504
    %v1824 = vunpack.c.l.b16 %v1505
    %v1825 = vunpack.c.h.b16 %v1505
    %v1826 = vunpack.c.l.b16 %v1506
    %v1827 = vunpack.c.l.b16 %v1507
    %v1828 = vunpack.c.h.b16 %v1507
    %v1829 = vunpack.c.l.b16 %v1508
    %v1830 = vunpack.c.l.b16 %v1509
    %v1831 = vunpack.c.h.b16 %v1509
    %v1832 = vunpack.c.l.b16 %v1510
    %v1833 = vunpack.c.l.b16 %v1511
    %v1834 = vunpack.c.h.b16 %v1511
    %v1835 = vunpack.c.l.b16 %v1512
    %v1836 = vunpack.c.l.b16 %v1513
    %v1837 = vunpack.c.h.b16 %v1513
    %v1838 = vunpack.c.l.b16 %v1514
    %v1839 = vunpack.c.l.b16 %v1515
    %v1840 = vunpack.c.h.b16 %v1515
    %v1841 = vunpack.c.l.b16 %v1516
    %v1842 = vunpack.c.l.b16 %v1517
    %v1843 = vunpack.c.h.b16 %v1517
    %v1844 = vunpack.c.l.b16 %v1518
    %v1845 = vunpack.c.l.b16 %v1519
    %v1846 = vunpack.c.h.b16 %v1519
    %v1847 = vunpack.c.l.b16 %v1520
    %v1848 = vunpack.c.l.b16 %v1521
    %v1849 = vunpack.c.h.b16 %v1521
    %v1850 = vunpack.c.l.b16 %v1522
    %v1851 = vunpack.c.l.b16 %v1523
    %v1852 = vunpack.c.h.b16 %v1523
    %v1853 = vunpack.c.l.b16 %v1524
    %v1854 = vunpack.c.l.b16 %v1525
    %v1855 = vunpack.c.h.b16 %v1525
    %v1856 = vunpack.c.l.b16 %v1526
    %v1857 = vunpack.c.l.b16 %v1527
    %v1858 = vunpack.c.h.b16 %v1527
    %v1859 = vunpack.c.l.b16 %v1528
    %v1860 = vunpack.c.l.b16 %v1529
    %v1861 = vunpack.c.h.b16 %v1529
    %v1862 = vunpack.c.l.b16 %v1530
    %v1863 = vunpack.c.l.b16 %v1531
    %v1864 = vunpack.c.h.b16 %v1531
    %v1865 = vunpack.c.l.b16 %v1532
    %v1866 = vunpack.c.l.b16 %v1533
    %v1867 = vunpack.c.h.b16 %v1533
    %v1868 = vunpack.c.l.b16 %v1534
    %v1869 = vunpack.c.l.b16 %v1535
    %v1870 = vunpack.c.h.b16 %v1535
    %v1871 = vunpack.c.l.b16 %v1536
    %v1872 = vunpack.c.l.b16 %v1537
    %v1873 = vunpack.c.h.b16 %v1537
    %v1874 = vunpack.c.l.b16 %v1538
    %v1875 = vunpack.c.l.b16 %v1539
    %v1876 = vunpack.c.h.b16 %v1539
    %v1877 = vunpack.c.l.b16 %v1540
    %v1878 = vpack.c.b16 %v1689, %v1686
    %v1879 = vpack.c.b16 %v1690, %v1687
    %v1880 = vpack.c.b16 %v1691, %v1688
    %v1881 = vpack.c.b16 %v1695, %v1692
    %v1882 = vpack.c.b16 %v1696, %v1693
    %v1883 = vpack.c.b16 %v1697, %v1694
    %v1884 = vpack.c.b16 %v1701, %v1698
    %v1885 = vpack.c.b16 %v1702, %v1699
    %v1886 = vpack.c.b16 %v1703, %v1700
    %v1887 = vpack.c.b16 %v1707, %v1704
    %v1888 = vpack.c.b16 %v1708, %v1705
    %v1889 = vpack.c.b16 %v1709, %v1706
    %v1890 = vpack.c.b16 %v1713, %v1710
    %v1891 = vpack.c.b16 %v1714, %v1711
    %v1892 = vpack.c.b16 %v1715, %v1712
    %v1893 = vpack.c.b16 %v1719, %v1716
    %v1894 = vpack.c.b16 %v1720, %v1717
    %v1895 = vpack.c.b16 %v1721, %v1718
    %v1896 = vpack.c.b16 %v1725, %v1722
    %v1897 = vpack.c.b16 %v1726, %v1723
    %v1898 = vpack.c.b16 %v1727, %v1724
    %v1899 = vpack.c.b16 %v1731, %v1728
    %v1900 = vpack.c.b16 %v1732, %v1729
    %v1901 = vpack.c.b16 %v1733, %v1730
    %v1902 = vpack.c.b16 %v1737, %v1734
    %v1903 = vpack.c.b16 %v1738, %v1735
    %v1904 = vpack.c.b16 %v1739, %v1736
    %v1905 = vpack.c.b16 %v1743, %v1740
    %v1906 = vpack.c.b16 %v1744, %v1741
    %v1907 = vpack.c.b16 %v1745, %v1742
    %v1908 = vpack.c.b16 %v1749, %v1746
    %v1909 = vpack.c.b16 %v1750, %v1747
    %v1910 = vpack.c.b16 %v1751, %v1748
    %v1911 = vpack.c.b16 %v1755, %v1752
    %v1912 = vpack.c.b16 %v1756, %v1753
    %v1913 = vpack.c.b16 %v1757, %v1754
    %v1914 = vpack.c.b16 %v1761, %v1758
    %v1915 = vpack.c.b16 %v1762, %v1759
    %v1916 = vpack.c.b16 %v1763, %v1760
    %v1917 = vpack.c.b16 %v1767, %v1764
    %v1918 = vpack.c.b16 %v1768, %v1765
    %v1919 = vpack.c.b16 %v1769, %v1766
    %v1920 = vpack.c.b16 %v1773, %v1770
    %v1921 = vpack.c.b16 %v1774, %v1771
    %v1922 = vpack.c.b16 %v1775, %v1772
    %v1923 = vpack.c.b16 %v1779, %v1776
    %v1924 = vpack.c.b16 %v1780, %v1777
    %v1925 = vpack.c.b16 %v1781, %v1778
    %v1926 = vpack.c.b16 %v1785, %v1782
    %v1927 = vpack.c.b16 %v1786, %v1783
    %v1928 = vpack.c.b16 %v1787, %v1784
    %v1929 = vpack.c.b16 %v1791, %v1788
    %v1930 = vpack.c.b16 %v1792, %v1789
    %v1931 = vpack.c.b16 %v1793, %v1790
    %v1932 = vpack.c.b16 %v1797, %v1794
    %v1933 = vpack.c.b16 %v1798, %v1795
    %v1934 = vpack.c.b16 %v1799, %v1796
    %v1935 = vpack.c.b16 %v1803, %v1800
    %v1936 = vpack.c.b16 %v1804, %v1801
    %v1937 = vpack.c.b16 %v1805, %v1802
    %v1938 = vpack.c.b16 %v1809, %v1806
    %v1939 = vpack.c.b16 %v1810, %v1807
    %v1940 = vpack.c.b16 %v1811, %v1808
    %v1941 = vpack.c.b16 %v1815, %v1812
    %v1942 = vpack.c.b16 %v1816, %v1813
    %v1943 = vpack.c.b16 %v1817, %v1814
    %v1944 = vpack.c.b16 %v1821, %v1818
    %v1945 = vpack.c.b16 %v1822, %v1819
    %v1946 = vpack.c.b16 %v1823, %v1820
    %v1947 = vpack.c.b16 %v1827, %v1824
    %v1948 = vpack.c.b16 %v1828, %v1825
    %v1949 = vpack.c.b16 %v1829, %v1826
    %v1950 = vpack.c.b16 %v1833, %v1830
    %v1951 = vpack.c.b16 %v1834, %v1831
    %v1952 = vpack.c.b16 %v1835, %v1832
    %v1953 = vpack.c.b16 %v1839, %v1836
    %v1954 = vpack.c.b16 %v1840, %v1837
    %v1955 = vpack.c.b16 %v1841, %v1838
    %v1956 = vpack.c.b16 %v1845, %v1842
    %v1957 = vpack.c.b16 %v1846, %v1843
    %v1958 = vpack.c.b16 %v1847, %v1844
    %v1959 = vpack.c.b16 %v1851, %v1848
    %v1960 = vpack.c.b16 %v1852, %v1849
    %v1961 = vpack.c.b16 %v1853, %v1850
    %v1962 = vpack.c.b16 %v1857, %v1854
    %v1963 = vpack.c.b16 %v1858, %v1855
    %v1964 = vpack.c.b16 %v1859, %v1856
    %v1965 = vpack.c.b16 %v1863, %v1860
    %v1966 = vpack.c.b16 %v1864, %v1861
    %v1967 = vpack.c.b16 %v1865, %v1862
    %v1968 = vpack.c.b16 %v1869, %v1866
    %v1969 = vpack.c.b16 %v1870, %v1867
    %v1970 = vpack.c.b16 %v1871, %v1868
    %v1971 = vpack.c.b16 %v1875, %v1872
    %v1972 = vpack.c.b16 %v1876, %v1873
    %v1973 = vpack.c.b16 %v1877, %v1874
    %2070 = vmatprep.subr.bf16.mxu0 %v1879
    %2071 = vmatpush1.bf16.msra.mxu0 %v1878
    %2072 = vmatprep.subr.bf16.mxu0 %v1882
    %2073 = vmatpush1.bf16.msra.mxu0 %v1881
    %2074 = vmatprep.subr.bf16.mxu0 %v1885
    %2075 = vmatpush1.bf16.msra.mxu0 %v1884
    %2076 = vmatprep.subr.bf16.mxu0 %v1888
    %2077 = vmatpush1.bf16.msra.mxu0 %v1887
    %2078 = vmatprep.subr.bf16.mxu0 %v1891
    %2079 = vmatpush1.bf16.msra.mxu0 %v1890
    %2080 = vmatprep.subr.bf16.mxu0 %v1894
    %2081 = vmatpush1.bf16.msra.mxu0 %v1893
    %2082 = vmatprep.subr.bf16.mxu0 %v1897
    %2083 = vmatpush1.bf16.msra.mxu0 %v1896
    %2084 = vmatprep.subr.bf16.mxu0 %v1900
    %2085 = vmatpush1.bf16.msra.mxu0 %v1899
    %2086 = vmatprep.subr.bf16.mxu0 %v1903
    %2087 = vmatpush1.bf16.msra.mxu0 %v1902
    %2088 = vmatprep.subr.bf16.mxu0 %v1906
    %2089 = vmatpush1.bf16.msra.mxu0 %v1905
    %2090 = vmatprep.subr.bf16.mxu0 %v1909
    %2091 = vmatpush1.bf16.msra.mxu0 %v1908
    %2092 = vmatprep.subr.bf16.mxu0 %v1912
    %2093 = vmatpush1.bf16.msra.mxu0 %v1911
    %2094 = vmatprep.subr.bf16.mxu0 %v1915
    %2095 = vmatpush1.bf16.msra.mxu0 %v1914
    %2096 = vmatprep.subr.bf16.mxu0 %v1918
    %2097 = vmatpush1.bf16.msra.mxu0 %v1917
    %2098 = vmatprep.subr.bf16.mxu0 %v1921
    %2099 = vmatpush1.bf16.msra.mxu0 %v1920
    %2100 = vmatprep.subr.bf16.mxu0 %v1924
    %2101 = vmatpush1.bf16.msra.mxu0 %v1923
    %2102 = vmatprep.mubr.bf16.mxu0 %v588
    %2103 = vmatmul.mubr.bf16.gmra.mrb[0].mxu0 %v587
    %v2104 = vpop.f32.mrb[0].mxu0
    %v2105 = vadd.f32 %v1546, %v2104
    %v2106 = vpop.f32.mrb[0].mxu0
    %v2107 = vadd.f32 %v1550, %v2106
    %v2108 = vpop.f32.mrb[0].mxu0
    %v2109 = vpop.f32.mrb[0].mxu0
    %2110 = vdwg.mxu0
    %2111 = vmatprep.subr.bf16.mxu0 %v1927
    %2112 = vmatpush1.bf16.msra.mxu0 %v1926
    %2113 = vmatprep.subr.bf16.mxu0 %v1930
    %2114 = vmatpush1.bf16.msra.mxu0 %v1929
    %2115 = vmatprep.subr.bf16.mxu0 %v1933
    %2116 = vmatpush1.bf16.msra.mxu0 %v1932
    %2117 = vmatprep.subr.bf16.mxu0 %v1936
    %2118 = vmatpush1.bf16.msra.mxu0 %v1935
    %2119 = vmatprep.subr.bf16.mxu0 %v1939
    %2120 = vmatpush1.bf16.msra.mxu0 %v1938
    %2121 = vmatprep.subr.bf16.mxu0 %v1942
    %2122 = vmatpush1.bf16.msra.mxu0 %v1941
    %2123 = vmatprep.subr.bf16.mxu0 %v1945
    %2124 = vmatpush1.bf16.msra.mxu0 %v1944
    %2125 = vmatprep.subr.bf16.mxu0 %v1948
    %2126 = vmatpush1.bf16.msra.mxu0 %v1947
    %2127 = vmatprep.subr.bf16.mxu0 %v1951
    %2128 = vmatpush1.bf16.msra.mxu0 %v1950
    %2129 = vmatprep.subr.bf16.mxu0 %v1954
    %2130 = vmatpush1.bf16.msra.mxu0 %v1953
    %2131 = vmatprep.subr.bf16.mxu0 %v1957
    %2132 = vmatpush1.bf16.msra.mxu0 %v1956
    %2133 = vmatprep.subr.bf16.mxu0 %v1960
    %2134 = vmatpush1.bf16.msra.mxu0 %v1959
    %2135 = vmatprep.subr.bf16.mxu0 %v1963
    %2136 = vmatpush1.bf16.msra.mxu0 %v1962
    %2137 = vmatprep.subr.bf16.mxu0 %v1966
    %2138 = vmatpush1.bf16.msra.mxu0 %v1965
    %2139 = vmatprep.subr.bf16.mxu0 %v1969
    %2140 = vmatpush1.bf16.msra.mxu0 %v1968
    %2141 = vmatprep.subr.bf16.mxu0 %v1972
    %2142 = vmatpush1.bf16.msra.mxu0 %v1971
    %2143 = vmatprep.mubr.bf16.mxu0 %v590
    %2144 = vmatmul.mubr.bf16.gmra.mrb[0].mxu0 %v589
    %v2145 = vpop.f32.mrb[0].mxu0
    %v2146 = vadd.f32 %v2105, %v2145
    %v2147 = vpop.f32.mrb[0].mxu0
    %v2148 = vadd.f32 %v2107, %v2147
    %v2149 = vpop.f32.mrb[0].mxu0
    %v2150 = vpop.f32.mrb[0].mxu0
    %2151 = vdwg.mxu0
    %2152 = vmatprep.subr.bf16.mxu0 0
    %2153 = vmatpush1.bf16.msra.mxu0 %v1880
    %2154 = vmatprep.subr.bf16.mxu0 0
    %2155 = vmatpush1.bf16.msra.mxu0 %v1883
    %2156 = vmatprep.subr.bf16.mxu0 0
    %2157 = vmatpush1.bf16.msra.mxu0 %v1886
    %2158 = vmatprep.subr.bf16.mxu0 0
    %2159 = vmatpush1.bf16.msra.mxu0 %v1889
    %2160 = vmatprep.subr.bf16.mxu0 0
    %2161 = vmatpush1.bf16.msra.mxu0 %v1892
    %2162 = vmatprep.subr.bf16.mxu0 0
    %2163 = vmatpush1.bf16.msra.mxu0 %v1895
    %2164 = vmatprep.subr.bf16.mxu0 0
    %2165 = vmatpush1.bf16.msra.mxu0 %v1898
    %2166 = vmatprep.subr.bf16.mxu0 0
    %2167 = vmatpush1.bf16.msra.mxu0 %v1901
    %2168 = vmatprep.subr.bf16.mxu0 0
    %2169 = vmatpush1.bf16.msra.mxu0 %v1904
    %2170 = vmatprep.subr.bf16.mxu0 0
    %2171 = vmatpush1.bf16.msra.mxu0 %v1907
    %2172 = vmatprep.subr.bf16.mxu0 0
    %2173 = vmatpush1.bf16.msra.mxu0 %v1910
    %2174 = vmatprep.subr.bf16.mxu0 0
    %2175 = vmatpush1.bf16.msra.mxu0 %v1913
    %2176 = vmatprep.subr.bf16.mxu0 0
    %2177 = vmatpush1.bf16.msra.mxu0 %v1916
    %2178 = vmatprep.subr.bf16.mxu0 0
    %2179 = vmatpush1.bf16.msra.mxu0 %v1919
    %2180 = vmatprep.subr.bf16.mxu0 0
    %2181 = vmatpush1.bf16.msra.mxu0 %v1922
    %2182 = vmatprep.subr.bf16.mxu0 0
    %2183 = vmatpush1.bf16.msra.mxu0 %v1925
    %2184 = vmatprep.mubr.bf16.mxu0 %v588
    %2185 = vmatmul.mubr.bf16.gmra.mrb[0].mxu0 %v587
    %v2186 = vpop.f32.mrb[0].mxu0
    %v2187 = vadd.f32 %v1554, %v2186
    %v2188 = vpop.f32.mrb[0].mxu0
    %v2189 = vpop.f32.mrb[0].mxu0
    %v2190 = vpop.f32.mrb[0].mxu0
    %2191 = vdwg.mxu0
    %2192 = vmatprep.subr.bf16.mxu0 0
    %2193 = vmatpush1.bf16.msra.mxu0 %v1928
    %2194 = vmatprep.subr.bf16.mxu0 0
    %2195 = vmatpush1.bf16.msra.mxu0 %v1931
    %2196 = vmatprep.subr.bf16.mxu0 0
    %2197 = vmatpush1.bf16.msra.mxu0 %v1934
    %2198 = vmatprep.subr.bf16.mxu0 0
    %2199 = vmatpush1.bf16.msra.mxu0 %v1937
    %2200 = vmatprep.subr.bf16.mxu0 0
    %2201 = vmatpush1.bf16.msra.mxu0 %v1940
    %2202 = vmatprep.subr.bf16.mxu0 0
    %2203 = vmatpush1.bf16.msra.mxu0 %v1943
    %2204 = vmatprep.subr.bf16.mxu0 0
    %2205 = vmatpush1.bf16.msra.mxu0 %v1946
    %2206 = vmatprep.subr.bf16.mxu0 0
    %2207 = vmatpush1.bf16.msra.mxu0 %v1949
    %2208 = vmatprep.subr.bf16.mxu0 0
    %2209 = vmatpush1.bf16.msra.mxu0 %v1952
    %2210 = vmatprep.subr.bf16.mxu0 0
    %2211 = vmatpush1.bf16.msra.mxu0 %v1955
    %2212 = vmatprep.subr.bf16.mxu0 0
    %2213 = vmatpush1.bf16.msra.mxu0 %v1958
    %2214 = vmatprep.subr.bf16.mxu0 0
    %2215 = vmatpush1.bf16.msra.mxu0 %v1961
    %2216 = vmatprep.subr.bf16.mxu0 0
    %2217 = vmatpush1.bf16.msra.mxu0 %v1964
    %2218 = vmatprep.subr.bf16.mxu0 0
    %2219 = vmatpush1.bf16.msra.mxu0 %v1967
    %2220 = vmatprep.subr.bf16.mxu0 0
    %2221 = vmatpush1.bf16.msra.mxu0 %v1970
    %2222 = vmatprep.subr.bf16.mxu0 0
    %2223 = vmatpush1.bf16.msra.mxu0 %v1973
    %2224 = vmatprep.mubr.bf16.mxu0 %v590
    %2225 = vmatmul.mubr.bf16.gmra.mrb[0].mxu0 %v589
    %v2226 = vpop.f32.mrb[0].mxu0
    %v2227 = vadd.f32 %v2187, %v2226
    %v2228 = vpop.f32.mrb[0].mxu0
    %v2229 = vpop.f32.mrb[0].mxu0
    %v2230 = vpop.f32.mrb[0].mxu0
    %2231 = vdwg.mxu0
    %v2232 = vmax.f32 %v2146, 0.0
    %v2233 = vmax.f32 %v2148, 0.0
    %v2234 = vmax.f32 %v2227, 0.0
    %v2235 = vld [vmem:[%s9] sm:$0x3f]
    %v2237 = vlaneseq
    %v2238 = vshrl.u32 %v2237, 7
    %v2239 = vsub.s32 0, %v2238
    %v2240 = vrot.slane %v2235, %v2239
    %v2241 = vlaneseq
    %v2242 = vshrl.u32 %v2241, 7
    %v2243 = vsub.s32 2, %v2242
    %v2244 = vrot.slane %v2235, %v2243
    %v2245 = vlaneseq
    %v2246 = vshrl.u32 %v2245, 7
    %v2247 = vsub.s32 4, %v2246
    %v2248 = vrot.slane %v2235, %v2247
    %v2252 = vlaneseq
    %v2253 = vshrl.u32 %v2252, 7
    %v2254 = vsub.s32 0, %v2253
    %v2255 = vrot.slane %v2240, %v2254
    %v2256 = vlaneseq
    %v2257 = vshrl.u32 %v2256, 7
    %v2258 = vsub.s32 0, %v2257
    %v2259 = vrot.slane %v2244, %v2258
    %v2260 = vlaneseq
    %v2261 = vshrl.u32 %v2260, 7
    %v2262 = vsub.s32 0, %v2261
    %v2263 = vrot.slane %v2248, %v2262
    %v2264 = vmul.f32 %v1410, %v2255
    %v2265 = vmul.f32 %v1411, %v2259
    %v2266 = vmul.f32 %v1412, %v2263
    %v2267 = vadd.f32 %v2264, %v2265
    %v2268 = vadd.f32 %v2267, %v2266
    %2269 = vadd.xlane.f32.xlu0 %v2268
    %v2270 = vpop.xlane.xlu0 %2269
    %v2271 = vlaneseq
    %v2272 = vshrl.u32 %v2271, 7
    %v2273 = vsub.s32 1, %v2272
    %v2274 = vrot.slane %v2235, %v2273
    %v2275 = vlaneseq
    %v2276 = vshrl.u32 %v2275, 7
    %v2277 = vsub.s32 3, %v2276
    %v2278 = vrot.slane %v2235, %v2277
    %v2279 = vlaneseq
    %v2280 = vshrl.u32 %v2279, 7
    %v2281 = vsub.s32 5, %v2280
    %v2282 = vrot.slane %v2235, %v2281
    %v2286 = vlaneseq
    %v2287 = vshrl.u32 %v2286, 7
    %v2288 = vsub.s32 1, %v2287
    %v2289 = vrot.slane %v2274, %v2288
    %v2290 = vlaneseq
    %v2291 = vshrl.u32 %v2290, 7
    %v2292 = vsub.s32 1, %v2291
    %v2293 = vrot.slane %v2278, %v2292
    %v2294 = vlaneseq
    %v2295 = vshrl.u32 %v2294, 7
    %v2296 = vsub.s32 1, %v2295
    %v2297 = vrot.slane %v2282, %v2296
    %v2298 = vmul.f32 %v2232, %v2289
    %v2299 = vmul.f32 %v2233, %v2293
    %v2300 = vmul.f32 %v2234, %v2297
    %v2301 = vadd.f32 %v2298, %v2299
    %v2302 = vadd.f32 %v2301, %v2300
    %2303 = vadd.xlane.f32.xlu0 %v2302
    %v2304 = vpop.xlane.xlu0 %2303
    %v2305 = vlaneseq
    %v2306 = vand.u32 %v2305, 127
    %vm2307 = vcmp.eq.s32.totalorder %v2306, 0
    %vm2308 = vcmp.eq.s32.totalorder %v2306, 1
    %v2309 = vsel %vm2308, %v2304, 0.0
    %v2310 = vsel %vm2307, %v2270, %v2309
    %v2311 = vld [vmem:[%s10] sm:$0x1]
    %v2313 = vlaneseq
    %v2314 = vshrl.u32 %v2313, 7
    %v2315 = vsub.s32 0, %v2314
    %v2316 = vrot.slane %v2311, %v2315
    %v2318 = vadd.f32 %v2310, %v2316
    %2319 = vst [vmem:[#allocation10] sm:$0xff] %v2318
    // Predicated region
    $region62: #{tpu_custom_call.1} parent=1 // pred_check
      _
    $region63: #{tpu_custom_call.1} parent=1 // pred_check_branch
      %2321 = sbr.rel (0) target = $region65
    $region64: #{tpu_custom_call.1} parent=1 // pred_region
      %s2323 = ssub.s32 128, 128
      %2324 = vsyncadd [#allocation4], %s2323
      %s2326 = sshll.u32 [#allocation10], 4
      %s2327 = int_to_ptr.vmem [resolvable:$true] %s2326
      %2329 = dma.vmem_to_hbm [thread:$0]  %s2327, 128, %s11, [#allocation4]
    $region65: #{tpu_custom_call.1} parent=1 // pred_fallthru
      _
    // Predicated region
    $region66: #{tpu_custom_call.1} parent=1 // pred_check
      _
    $region67: #{tpu_custom_call.1} parent=1 // pred_check_branch
      %2331 = sbr.rel (0) target = $region69
    $region68: #{tpu_custom_call.1} parent=1 // pred_region
      %2332 = dma.done [#allocation4], 128
    $region69: #{tpu_custom_call.1} parent=1 // pred_fallthru
      _
    %2333 = vsyncpa [#allocation3], 1
    %2334 = vsyncpa [#allocation6], 1
    %2335 = vsyncpa [#allocation9], 1
    %2336 = vsyncpa [#allocation4], 1

</llo_original>
